<compile_context>
chip_gen: v5e
topology: v5e:2x2
jax: 0.10.0
libtpu: 0.0.40
codegen_flags: <defaults>
</compile_context>

<pallas_src>
import math

import numpy as np
import jax
import jax.numpy as jnp
from jax import lax
from jax.experimental import pallas as pl
from jax.experimental.pallas import tpu as pltpu


def _gaussian_1d(window_size: int, sigma: float) -> np.ndarray:
    g = np.array(
        [math.exp(-((x - window_size // 2) ** 2) / float(2 * sigma ** 2))
         for x in range(window_size)],
        dtype=np.float32,
    )
    return g / g.sum()


def _band_matrix(g: np.ndarray, n: int) -> np.ndarray:
    """Banded matrix B with B[i, k] = g[k - i + p].

    Left-multiplying a plane by B (or right-multiplying by it) performs the
    1-D "same" Gaussian conv along that axis with implicit zero padding,
    exactly matching F.conv2d(padding=ws//2) (g is symmetric, so
    cross-correlation == convolution and B is symmetric).
    """
    ws = len(g)
    p = ws // 2
    m = np.zeros((n, n), dtype=np.float32)
    for i in range(n):
        for k in range(max(0, i - p), min(n, i + p + 1)):
            m[i, k] = g[k - i + p]
    return m


def _choose_tile_nc(NC, H, W, budget_bytes=20 * 1024 * 1024, max_tile=16):
    """Planes per grid step: as many as comfortably fit the VMEM budget
    (sized with v7x's 64 MiB VMEM in mind), capped for trace size, preferring
    >= 2 grid steps so the 'parallel' axis can shard across v7x's 2 TCs."""
    per_plane = H * W * 4
    # ~18 live per-plane-sized f32 buffers: 2 inputs x 2 pipeline buffers,
    # the 5-map stacked operand, its conv result, and per-plane temporaries.
    cap = max(1, budget_bytes // (per_plane * 18))
    cap = min(cap, max_tile, NC)
    divisors = [d for d in range(1, NC + 1) if NC % d == 0 and d <= cap]
    multi = [d for d in divisors if NC // d >= 2]
    return max(multi) if multi else max(divisors)


def _make_ssim_kernel(T, H, W, C1, C2):
    LANES = 128

    def kernel(img1_ref, img2_ref, gh_ref, gv_ref, out_ref):
        x1 = img1_ref[...].reshape(T * H, W)     # (T*H, W)
        x2 = img2_ref[...].reshape(T * H, W)

        # Stack the 5 conv operands along rows -> one big MXU matmul for the
        # horizontal ("same" along W) Gaussian pass.
        stack = jnp.concatenate(
            [x1, x2, x1 * x1, x2 * x2, x1 * x2], axis=0)       # (5*T*H, W)
        yh = jnp.dot(stack, gh_ref[...],
                     preferred_element_type=jnp.float32)        # (5*T*H, W)
        yh = yh.reshape(5 * T, H, W)

        gv = gv_ref[...]                                        # (H, H)
        lane = lax.broadcasted_iota(jnp.int32, (1, LANES), 1)
        row = jnp.zeros((1, LANES), dtype=jnp.float32)

        for p_idx in range(T):
            # Vertical ("same" along H) Gaussian pass on the MXU, per plane.
            mu1 = jnp.dot(gv, yh[0 * T + p_idx], preferred_element_type=jnp.float32)
            mu2 = jnp.dot(gv, yh[1 * T + p_idx], preferred_element_type=jnp.float32)
            e11 = jnp.dot(gv, yh[2 * T + p_idx], preferred_element_type=jnp.float32)
            e22 = jnp.dot(gv, yh[3 * T + p_idx], preferred_element_type=jnp.float32)
            e12 = jnp.dot(gv, yh[4 * T + p_idx], preferred_element_type=jnp.float32)

            mu1_sq = mu1 * mu1
            mu2_sq = mu2 * mu2
            mu1_mu2 = mu1 * mu2
            sigma1_sq = e11 - mu1_sq
            sigma2_sq = e22 - mu2_sq
            sigma12 = e12 - mu1_mu2

            num = (2.0 * mu1_mu2 + C1) * (2.0 * sigma12 + C2)
            den = (mu1_sq + mu2_sq + C1) * (sigma1_sq + sigma2_sq + C2)
            s = jnp.sum(num / den)                  # per-plane sum of ssim_map

            row = jnp.where(lane == p_idx, s, row)  # pack: one lane per plane

        out_ref[...] = jnp.broadcast_to(row.reshape(1, 1, LANES), out_ref.shape)

    return kernel


def ssim_pallas(img1, img2, window_size=11, size_average=True):
    N, C, H, W = img1.shape
    NC = N * C
    T = _choose_tile_nc(NC, H, W)
    NB = NC // T

    g = _gaussian_1d(window_size, 1.5)
    gv = jnp.asarray(_band_matrix(g, H))   # (H, H): vertical pass (left mult)
    gh = jnp.asarray(_band_matrix(g, W))   # (W, W): horizontal pass (right mult)
    C1 = 0.01 ** 2
    C2 = 0.03 ** 2

    # NCHW -> (N*C, H, W) is a free (metadata-only) reshape; no host padding.
    x1 = img1.astype(jnp.float32).reshape(NC, H, W)
    x2 = img2.astype(jnp.float32).reshape(NC, H, W)

    kernel = _make_ssim_kernel(T, H, W, C1, C2)

    out = pl.pallas_call(
        kernel,
        out_shape=jax.ShapeDtypeStruct((NB, 8, 128), jnp.float32),
        grid_spec=pltpu.PrefetchScalarGridSpec(
            num_scalar_prefetch=0,
            grid=(NB,),
            in_specs=[
                pl.BlockSpec((T, H, W), lambda i: (i, 0, 0)),
                pl.BlockSpec((T, H, W), lambda i: (i, 0, 0)),
                pl.BlockSpec((W, W), lambda i: (0, 0)),   # Gh constant
                pl.BlockSpec((H, H), lambda i: (0, 0)),   # Gv constant
            ],
            out_specs=pl.BlockSpec((1, 8, 128), lambda i: (i, 0, 0)),
        ),
        compiler_params=pltpu.CompilerParams(
            dimension_semantics=("parallel",),
            vmem_limit_bytes=48 * 1024 * 1024,
        ),
    )(x1, x2, gh, gv)

    # Block i holds the sums for planes [i*T, (i+1)*T) in lanes [0, T).
    plane_sums = out[:, 0, :T].reshape(NC)
    if size_average:
        # ssim_map.mean() over all (N, C, H, W) elements
        return jnp.sum(plane_sums) / (NC * H * W)
    else:
        # ssim_map.mean(1).mean(1).mean(1) -> per-batch mean over (C, H, W)
        return plane_sums.reshape(N, C).sum(axis=1) / (C * H * W)


def ssim_reference(img1, img2, window_size=11, size_average=True):
    """Pure-JAX reference identical to the PyTorch _ssim."""
    N, C, H, W = img1.shape
    g = _gaussian_1d(window_size, 1.5)
    w2d = np.outer(g, g).astype(np.float32)
    window = jnp.asarray(
        np.broadcast_to(w2d, (C, 1, window_size, window_size)).copy())
    pad = window_size // 2

    def conv(x):
        return lax.conv_general_dilated(
            x, window, window_strides=(1, 1),
            padding=[(pad, pad), (pad, pad)],
            dimension_numbers=("NCHW", "OIHW", "NCHW"),
            feature_group_count=C,
            precision=lax.Precision.HIGHEST)

    mu1, mu2 = conv(img1), conv(img2)
    mu1_sq, mu2_sq, mu1_mu2 = mu1 ** 2, mu2 ** 2, mu1 * mu2
    sigma1_sq = conv(img1 * img1) - mu1_sq
    sigma2_sq = conv(img2 * img2) - mu2_sq
    sigma12 = conv(img1 * img2) - mu1_mu2
    C1, C2 = 0.01 ** 2, 0.03 ** 2
    ssim_map = ((2 * mu1_mu2 + C1) * (2 * sigma12 + C2)
                / ((mu1_sq + mu2_sq + C1) * (sigma1_sq + sigma2_sq + C2)))
    if size_average:
        return ssim_map.mean()
    return ssim_map.mean(axis=(1, 2, 3))


if __name__ == "__main__":
    key = jax.random.PRNGKey(0)
    k1, k2 = jax.random.split(key)
    N, C, H, W = 2, 4, 16, 16
    img1 = jax.random.uniform(k1, (N, C, H, W), dtype=jnp.float32)
    img2 = jax.random.uniform(k2, (N, C, H, W), dtype=jnp.float32)

    # size_average=True branch
    out = ssim_pallas(img1, img2, window_size=11, size_average=True)
    out = jax.block_until_ready(out)
    ref = ssim_reference(img1, img2, window_size=11, size_average=True)
    np.testing.assert_allclose(np.asarray(out), np.asarray(ref),
                               rtol=2e-4, atol=2e-5)

    # size_average=False branch (per-batch means)
    out_b = ssim_pallas(img1, img2, window_size=11, size_average=False)
    out_b = jax.block_until_ready(out_b)
    ref_b = ssim_reference(img1, img2, window_size=11, size_average=False)
    np.testing.assert_allclose(np.asarray(out_b), np.asarray(ref_b),
                               rtol=2e-4, atol=2e-5)

    print("KERNEL_OK")
</pallas_src>

<mosaic_0001>
module attributes {stable_mosaic.version = 11 : i64} {
  func.func @kernel(%arg0: i32, %arg1: memref<4x16x16xf32, #tpu.memory_space<vmem>>, %arg2: memref<4x16x16xf32, #tpu.memory_space<vmem>>, %arg3: memref<16x16xf32, #tpu.memory_space<vmem>>, %arg4: memref<16x16xf32, #tpu.memory_space<vmem>>, %arg5: memref<1x8x128xf32, #tpu.memory_space<vmem>>) attributes {dimension_semantics = [#tpu.dimension_semantics<parallel>], iteration_bounds = array<i64: 2>, scalar_prefetch = 0 : i64, scratch_operands = 0 : i64, tpu.core_type = #tpu.core_type<tc>, window_params = [{transform_indices = @transform_0, window_bounds = array<i64: 4, 16, 16>}, {transform_indices = @transform_1, window_bounds = array<i64: 4, 16, 16>}, {pipeline_mode = #tpu.pipeline_mode<synchronous>, transform_indices = @transform_2, window_bounds = array<i64: 16, 16>}, {pipeline_mode = #tpu.pipeline_mode<synchronous>, transform_indices = @transform_3, window_bounds = array<i64: 16, 16>}, {transform_indices = @transform_4, window_bounds = array<i64: 1, 8, 128>}]} {
    %c0 = arith.constant 0 : index
    %c0_0 = arith.constant 0 : index
    %c0_1 = arith.constant 0 : index
    %0 = vector.load %arg1[%c0, %c0_0, %c0_1] : memref<4x16x16xf32, #tpu.memory_space<vmem>>, vector<4x16x16xf32>
    %1 = vector.shape_cast %0 : vector<4x16x16xf32> to vector<64x16xf32>
    %c0_2 = arith.constant 0 : index
    %c0_3 = arith.constant 0 : index
    %c0_4 = arith.constant 0 : index
    %2 = vector.load %arg2[%c0_2, %c0_3, %c0_4] : memref<4x16x16xf32, #tpu.memory_space<vmem>>, vector<4x16x16xf32>
    %3 = vector.shape_cast %2 : vector<4x16x16xf32> to vector<64x16xf32>
    %4 = arith.mulf %1, %1 : vector<64x16xf32>
    %5 = arith.mulf %3, %3 : vector<64x16xf32>
    %6 = arith.mulf %1, %3 : vector<64x16xf32>
    %7 = tpu.concatenate %1, %3, %4, %5, %6 in 0 : vector<64x16xf32>, vector<64x16xf32>, vector<64x16xf32>, vector<64x16xf32>, vector<64x16xf32> -> vector<320x16xf32>
    %c0_5 = arith.constant 0 : index
    %c0_6 = arith.constant 0 : index
    %8 = vector.load %arg3[%c0_5, %c0_6] : memref<16x16xf32, #tpu.memory_space<vmem>>, vector<16x16xf32>
    %cst = arith.constant dense<0.000000e+00> : vector<320x16xf32>
    %9 = tpu.matmul %7, %8, %cst {dimension_numbers = #tpu.dot_dimension_numbers<[1], [0], [0], [1], [0, 0, 1, 1], [], []>} : vector<320x16xf32>, vector<16x16xf32>, vector<320x16xf32> -> vector<320x16xf32>
    %10 = vector.shape_cast %9 : vector<320x16xf32> to vector<20x16x16xf32>
    %c0_7 = arith.constant 0 : index
    %c0_8 = arith.constant 0 : index
    %11 = vector.load %arg4[%c0_7, %c0_8] : memref<16x16xf32, #tpu.memory_space<vmem>>, vector<16x16xf32>
    %12 = tpu.iota {dimensions = array<i32: 1>} : vector<1x128xi32>
    %cst_9 = arith.constant 0.000000e+00 : f32
    %13 = vector.broadcast %cst_9 : f32 to vector<1x128xf32>
    %14 = vector.extract_strided_slice %10 {offsets = [0, 0, 0], sizes = [1, 16, 16], strides = [1, 1, 1]} : vector<20x16x16xf32> to vector<1x16x16xf32>
    %15 = vector.shape_cast %14 : vector<1x16x16xf32> to vector<16x16xf32>
    %cst_10 = arith.constant dense<0.000000e+00> : vector<16x16xf32>
    %16 = tpu.matmul %11, %15, %cst_10 {dimension_numbers = #tpu.dot_dimension_numbers<[1], [0], [0], [1], [0, 0, 1, 1], [], []>} : vector<16x16xf32>, vector<16x16xf32>, vector<16x16xf32> -> vector<16x16xf32>
    %17 = vector.extract_strided_slice %10 {offsets = [4, 0, 0], sizes = [1, 16, 16], strides = [1, 1, 1]} : vector<20x16x16xf32> to vector<1x16x16xf32>
    %18 = vector.shape_cast %17 : vector<1x16x16xf32> to vector<16x16xf32>
    %cst_11 = arith.constant dense<0.000000e+00> : vector<16x16xf32>
    %19 = tpu.matmul %11, %18, %cst_11 {dimension_numbers = #tpu.dot_dimension_numbers<[1], [0], [0], [1], [0, 0, 1, 1], [], []>} : vector<16x16xf32>, vector<16x16xf32>, vector<16x16xf32> -> vector<16x16xf32>
    %20 = vector.extract_strided_slice %10 {offsets = [8, 0, 0], sizes = [1, 16, 16], strides = [1, 1, 1]} : vector<20x16x16xf32> to vector<1x16x16xf32>
    %21 = vector.shape_cast %20 : vector<1x16x16xf32> to vector<16x16xf32>
    %cst_12 = arith.constant dense<0.000000e+00> : vector<16x16xf32>
    %22 = tpu.matmul %11, %21, %cst_12 {dimension_numbers = #tpu.dot_dimension_numbers<[1], [0], [0], [1], [0, 0, 1, 1], [], []>} : vector<16x16xf32>, vector<16x16xf32>, vector<16x16xf32> -> vector<16x16xf32>
    %23 = vector.extract_strided_slice %10 {offsets = [12, 0, 0], sizes = [1, 16, 16], strides = [1, 1, 1]} : vector<20x16x16xf32> to vector<1x16x16xf32>
    %24 = vector.shape_cast %23 : vector<1x16x16xf32> to vector<16x16xf32>
    %cst_13 = arith.constant dense<0.000000e+00> : vector<16x16xf32>
    %25 = tpu.matmul %11, %24, %cst_13 {dimension_numbers = #tpu.dot_dimension_numbers<[1], [0], [0], [1], [0, 0, 1, 1], [], []>} : vector<16x16xf32>, vector<16x16xf32>, vector<16x16xf32> -> vector<16x16xf32>
    %26 = vector.extract_strided_slice %10 {offsets = [16, 0, 0], sizes = [1, 16, 16], strides = [1, 1, 1]} : vector<20x16x16xf32> to vector<1x16x16xf32>
    %27 = vector.shape_cast %26 : vector<1x16x16xf32> to vector<16x16xf32>
    %cst_14 = arith.constant dense<0.000000e+00> : vector<16x16xf32>
    %28 = tpu.matmul %11, %27, %cst_14 {dimension_numbers = #tpu.dot_dimension_numbers<[1], [0], [0], [1], [0, 0, 1, 1], [], []>} : vector<16x16xf32>, vector<16x16xf32>, vector<16x16xf32> -> vector<16x16xf32>
    %29 = arith.mulf %16, %16 : vector<16x16xf32>
    %30 = arith.mulf %19, %19 : vector<16x16xf32>
    %31 = arith.mulf %16, %19 : vector<16x16xf32>
    %32 = arith.subf %22, %29 : vector<16x16xf32>
    %33 = arith.subf %25, %30 : vector<16x16xf32>
    %34 = arith.subf %28, %31 : vector<16x16xf32>
    %cst_15 = arith.constant 2.000000e+00 : f32
    %35 = vector.broadcast %cst_15 : f32 to vector<16x16xf32>
    %36 = arith.mulf %35, %31 : vector<16x16xf32>
    %cst_16 = arith.constant 9.99999974E-5 : f32
    %37 = vector.broadcast %cst_16 : f32 to vector<16x16xf32>
    %38 = arith.addf %36, %37 : vector<16x16xf32>
    %cst_17 = arith.constant 2.000000e+00 : f32
    %39 = vector.broadcast %cst_17 : f32 to vector<16x16xf32>
    %40 = arith.mulf %39, %34 : vector<16x16xf32>
    %cst_18 = arith.constant 8.99999984E-4 : f32
    %41 = vector.broadcast %cst_18 : f32 to vector<16x16xf32>
    %42 = arith.addf %40, %41 : vector<16x16xf32>
    %43 = arith.mulf %38, %42 : vector<16x16xf32>
    %44 = arith.addf %29, %30 : vector<16x16xf32>
    %cst_19 = arith.constant 9.99999974E-5 : f32
    %45 = vector.broadcast %cst_19 : f32 to vector<16x16xf32>
    %46 = arith.addf %44, %45 : vector<16x16xf32>
    %47 = arith.addf %32, %33 : vector<16x16xf32>
    %cst_20 = arith.constant 8.99999984E-4 : f32
    %48 = vector.broadcast %cst_20 : f32 to vector<16x16xf32>
    %49 = arith.addf %47, %48 : vector<16x16xf32>
    %50 = arith.mulf %46, %49 : vector<16x16xf32>
    %51 = arith.divf %43, %50 : vector<16x16xf32>
    %52 = vector.shape_cast %51 : vector<16x16xf32> to vector<1x16x16xf32>
    %cst_21 = arith.constant dense<0.000000e+00> : vector<1xf32>
    %53 = vector.multi_reduction <add>, %52, %cst_21 [1, 2] : vector<1x16x16xf32> to vector<1xf32>
    %54 = vector.shape_cast %53 : vector<1xf32> to vector<1x1x1xf32>
    %55 = vector.extract %54[0, 0, 0] : f32 from vector<1x1x1xf32>
    %c0_i32 = arith.constant 0 : i32
    %56 = vector.broadcast %c0_i32 : i32 to vector<1x128xi32>
    %57 = arith.cmpi eq, %12, %56 : vector<1x128xi32>
    %58 = vector.broadcast %55 : f32 to vector<1x128xf32>
    %59 = arith.select %57, %58, %13 : vector<1x128xi1>, vector<1x128xf32>
    %60 = vector.extract_strided_slice %10 {offsets = [1, 0, 0], sizes = [1, 16, 16], strides = [1, 1, 1]} : vector<20x16x16xf32> to vector<1x16x16xf32>
    %61 = vector.shape_cast %60 : vector<1x16x16xf32> to vector<16x16xf32>
    %cst_22 = arith.constant dense<0.000000e+00> : vector<16x16xf32>
    %62 = tpu.matmul %11, %61, %cst_22 {dimension_numbers = #tpu.dot_dimension_numbers<[1], [0], [0], [1], [0, 0, 1, 1], [], []>} : vector<16x16xf32>, vector<16x16xf32>, vector<16x16xf32> -> vector<16x16xf32>
    %63 = vector.extract_strided_slice %10 {offsets = [5, 0, 0], sizes = [1, 16, 16], strides = [1, 1, 1]} : vector<20x16x16xf32> to vector<1x16x16xf32>
    %64 = vector.shape_cast %63 : vector<1x16x16xf32> to vector<16x16xf32>
    %cst_23 = arith.constant dense<0.000000e+00> : vector<16x16xf32>
    %65 = tpu.matmul %11, %64, %cst_23 {dimension_numbers = #tpu.dot_dimension_numbers<[1], [0], [0], [1], [0, 0, 1, 1], [], []>} : vector<16x16xf32>, vector<16x16xf32>, vector<16x16xf32> -> vector<16x16xf32>
    %66 = vector.extract_strided_slice %10 {offsets = [9, 0, 0], sizes = [1, 16, 16], strides = [1, 1, 1]} : vector<20x16x16xf32> to vector<1x16x16xf32>
    %67 = vector.shape_cast %66 : vector<1x16x16xf32> to vector<16x16xf32>
    %cst_24 = arith.constant dense<0.000000e+00> : vector<16x16xf32>
    %68 = tpu.matmul %11, %67, %cst_24 {dimension_numbers = #tpu.dot_dimension_numbers<[1], [0], [0], [1], [0, 0, 1, 1], [], []>} : vector<16x16xf32>, vector<16x16xf32>, vector<16x16xf32> -> vector<16x16xf32>
    %69 = vector.extract_strided_slice %10 {offsets = [13, 0, 0], sizes = [1, 16, 16], strides = [1, 1, 1]} : vector<20x16x16xf32> to vector<1x16x16xf32>
    %70 = vector.shape_cast %69 : vector<1x16x16xf32> to vector<16x16xf32>
    %cst_25 = arith.constant dense<0.000000e+00> : vector<16x16xf32>
    %71 = tpu.matmul %11, %70, %cst_25 {dimension_numbers = #tpu.dot_dimension_numbers<[1], [0], [0], [1], [0, 0, 1, 1], [], []>} : vector<16x16xf32>, vector<16x16xf32>, vector<16x16xf32> -> vector<16x16xf32>
    %72 = vector.extract_strided_slice %10 {offsets = [17, 0, 0], sizes = [1, 16, 16], strides = [1, 1, 1]} : vector<20x16x16xf32> to vector<1x16x16xf32>
    %73 = vector.shape_cast %72 : vector<1x16x16xf32> to vector<16x16xf32>
    %cst_26 = arith.constant dense<0.000000e+00> : vector<16x16xf32>
    %74 = tpu.matmul %11, %73, %cst_26 {dimension_numbers = #tpu.dot_dimension_numbers<[1], [0], [0], [1], [0, 0, 1, 1], [], []>} : vector<16x16xf32>, vector<16x16xf32>, vector<16x16xf32> -> vector<16x16xf32>
    %75 = arith.mulf %62, %62 : vector<16x16xf32>
    %76 = arith.mulf %65, %65 : vector<16x16xf32>
    %77 = arith.mulf %62, %65 : vector<16x16xf32>
    %78 = arith.subf %68, %75 : vector<16x16xf32>
    %79 = arith.subf %71, %76 : vector<16x16xf32>
    %80 = arith.subf %74, %77 : vector<16x16xf32>
    %cst_27 = arith.constant 2.000000e+00 : f32
    %81 = vector.broadcast %cst_27 : f32 to vector<16x16xf32>
    %82 = arith.mulf %81, %77 : vector<16x16xf32>
    %cst_28 = arith.constant 9.99999974E-5 : f32
    %83 = vector.broadcast %cst_28 : f32 to vector<16x16xf32>
    %84 = arith.addf %82, %83 : vector<16x16xf32>
    %cst_29 = arith.constant 2.000000e+00 : f32
    %85 = vector.broadcast %cst_29 : f32 to vector<16x16xf32>
    %86 = arith.mulf %85, %80 : vector<16x16xf32>
    %cst_30 = arith.constant 8.99999984E-4 : f32
    %87 = vector.broadcast %cst_30 : f32 to vector<16x16xf32>
    %88 = arith.addf %86, %87 : vector<16x16xf32>
    %89 = arith.mulf %84, %88 : vector<16x16xf32>
    %90 = arith.addf %75, %76 : vector<16x16xf32>
    %cst_31 = arith.constant 9.99999974E-5 : f32
    %91 = vector.broadcast %cst_31 : f32 to vector<16x16xf32>
    %92 = arith.addf %90, %91 : vector<16x16xf32>
    %93 = arith.addf %78, %79 : vector<16x16xf32>
    %cst_32 = arith.constant 8.99999984E-4 : f32
    %94 = vector.broadcast %cst_32 : f32 to vector<16x16xf32>
    %95 = arith.addf %93, %94 : vector<16x16xf32>
    %96 = arith.mulf %92, %95 : vector<16x16xf32>
    %97 = arith.divf %89, %96 : vector<16x16xf32>
    %98 = vector.shape_cast %97 : vector<16x16xf32> to vector<1x16x16xf32>
    %cst_33 = arith.constant dense<0.000000e+00> : vector<1xf32>
    %99 = vector.multi_reduction <add>, %98, %cst_33 [1, 2] : vector<1x16x16xf32> to vector<1xf32>
    %100 = vector.shape_cast %99 : vector<1xf32> to vector<1x1x1xf32>
    %101 = vector.extract %100[0, 0, 0] : f32 from vector<1x1x1xf32>
    %c1_i32 = arith.constant 1 : i32
    %102 = vector.broadcast %c1_i32 : i32 to vector<1x128xi32>
    %103 = arith.cmpi eq, %12, %102 : vector<1x128xi32>
    %104 = vector.broadcast %101 : f32 to vector<1x128xf32>
    %105 = arith.select %103, %104, %59 : vector<1x128xi1>, vector<1x128xf32>
    %106 = vector.extract_strided_slice %10 {offsets = [2, 0, 0], sizes = [1, 16, 16], strides = [1, 1, 1]} : vector<20x16x16xf32> to vector<1x16x16xf32>
    %107 = vector.shape_cast %106 : vector<1x16x16xf32> to vector<16x16xf32>
    %cst_34 = arith.constant dense<0.000000e+00> : vector<16x16xf32>
    %108 = tpu.matmul %11, %107, %cst_34 {dimension_numbers = #tpu.dot_dimension_numbers<[1], [0], [0], [1], [0, 0, 1, 1], [], []>} : vector<16x16xf32>, vector<16x16xf32>, vector<16x16xf32> -> vector<16x16xf32>
    %109 = vector.extract_strided_slice %10 {offsets = [6, 0, 0], sizes = [1, 16, 16], strides = [1, 1, 1]} : vector<20x16x16xf32> to vector<1x16x16xf32>
    %110 = vector.shape_cast %109 : vector<1x16x16xf32> to vector<16x16xf32>
    %cst_35 = arith.constant dense<0.000000e+00> : vector<16x16xf32>
    %111 = tpu.matmul %11, %110, %cst_35 {dimension_numbers = #tpu.dot_dimension_numbers<[1], [0], [0], [1], [0, 0, 1, 1], [], []>} : vector<16x16xf32>, vector<16x16xf32>, vector<16x16xf32> -> vector<16x16xf32>
    %112 = vector.extract_strided_slice %10 {offsets = [10, 0, 0], sizes = [1, 16, 16], strides = [1, 1, 1]} : vector<20x16x16xf32> to vector<1x16x16xf32>
    %113 = vector.shape_cast %112 : vector<1x16x16xf32> to vector<16x16xf32>
    %cst_36 = arith.constant dense<0.000000e+00> : vector<16x16xf32>
    %114 = tpu.matmul %11, %113, %cst_36 {dimension_numbers = #tpu.dot_dimension_numbers<[1], [0], [0], [1], [0, 0, 1, 1], [], []>} : vector<16x16xf32>, vector<16x16xf32>, vector<16x16xf32> -> vector<16x16xf32>
    %115 = vector.extract_strided_slice %10 {offsets = [14, 0, 0], sizes = [1, 16, 16], strides = [1, 1, 1]} : vector<20x16x16xf32> to vector<1x16x16xf32>
    %116 = vector.shape_cast %115 : vector<1x16x16xf32> to vector<16x16xf32>
    %cst_37 = arith.constant dense<0.000000e+00> : vector<16x16xf32>
    %117 = tpu.matmul %11, %116, %cst_37 {dimension_numbers = #tpu.dot_dimension_numbers<[1], [0], [0], [1], [0, 0, 1, 1], [], []>} : vector<16x16xf32>, vector<16x16xf32>, vector<16x16xf32> -> vector<16x16xf32>
    %118 = vector.extract_strided_slice %10 {offsets = [18, 0, 0], sizes = [1, 16, 16], strides = [1, 1, 1]} : vector<20x16x16xf32> to vector<1x16x16xf32>
    %119 = vector.shape_cast %118 : vector<1x16x16xf32> to vector<16x16xf32>
    %cst_38 = arith.constant dense<0.000000e+00> : vector<16x16xf32>
    %120 = tpu.matmul %11, %119, %cst_38 {dimension_numbers = #tpu.dot_dimension_numbers<[1], [0], [0], [1], [0, 0, 1, 1], [], []>} : vector<16x16xf32>, vector<16x16xf32>, vector<16x16xf32> -> vector<16x16xf32>
    %121 = arith.mulf %108, %108 : vector<16x16xf32>
    %122 = arith.mulf %111, %111 : vector<16x16xf32>
    %123 = arith.mulf %108, %111 : vector<16x16xf32>
    %124 = arith.subf %114, %121 : vector<16x16xf32>
    %125 = arith.subf %117, %122 : vector<16x16xf32>
    %126 = arith.subf %120, %123 : vector<16x16xf32>
    %cst_39 = arith.constant 2.000000e+00 : f32
    %127 = vector.broadcast %cst_39 : f32 to vector<16x16xf32>
    %128 = arith.mulf %127, %123 : vector<16x16xf32>
    %cst_40 = arith.constant 9.99999974E-5 : f32
    %129 = vector.broadcast %cst_40 : f32 to vector<16x16xf32>
    %130 = arith.addf %128, %129 : vector<16x16xf32>
    %cst_41 = arith.constant 2.000000e+00 : f32
    %131 = vector.broadcast %cst_41 : f32 to vector<16x16xf32>
    %132 = arith.mulf %131, %126 : vector<16x16xf32>
    %cst_42 = arith.constant 8.99999984E-4 : f32
    %133 = vector.broadcast %cst_42 : f32 to vector<16x16xf32>
    %134 = arith.addf %132, %133 : vector<16x16xf32>
    %135 = arith.mulf %130, %134 : vector<16x16xf32>
    %136 = arith.addf %121, %122 : vector<16x16xf32>
    %cst_43 = arith.constant 9.99999974E-5 : f32
    %137 = vector.broadcast %cst_43 : f32 to vector<16x16xf32>
    %138 = arith.addf %136, %137 : vector<16x16xf32>
    %139 = arith.addf %124, %125 : vector<16x16xf32>
    %cst_44 = arith.constant 8.99999984E-4 : f32
    %140 = vector.broadcast %cst_44 : f32 to vector<16x16xf32>
    %141 = arith.addf %139, %140 : vector<16x16xf32>
    %142 = arith.mulf %138, %141 : vector<16x16xf32>
    %143 = arith.divf %135, %142 : vector<16x16xf32>
    %144 = vector.shape_cast %143 : vector<16x16xf32> to vector<1x16x16xf32>
    %cst_45 = arith.constant dense<0.000000e+00> : vector<1xf32>
    %145 = vector.multi_reduction <add>, %144, %cst_45 [1, 2] : vector<1x16x16xf32> to vector<1xf32>
    %146 = vector.shape_cast %145 : vector<1xf32> to vector<1x1x1xf32>
    %147 = vector.extract %146[0, 0, 0] : f32 from vector<1x1x1xf32>
    %c2_i32 = arith.constant 2 : i32
    %148 = vector.broadcast %c2_i32 : i32 to vector<1x128xi32>
    %149 = arith.cmpi eq, %12, %148 : vector<1x128xi32>
    %150 = vector.broadcast %147 : f32 to vector<1x128xf32>
    %151 = arith.select %149, %150, %105 : vector<1x128xi1>, vector<1x128xf32>
    %152 = vector.extract_strided_slice %10 {offsets = [3, 0, 0], sizes = [1, 16, 16], strides = [1, 1, 1]} : vector<20x16x16xf32> to vector<1x16x16xf32>
    %153 = vector.shape_cast %152 : vector<1x16x16xf32> to vector<16x16xf32>
    %cst_46 = arith.constant dense<0.000000e+00> : vector<16x16xf32>
    %154 = tpu.matmul %11, %153, %cst_46 {dimension_numbers = #tpu.dot_dimension_numbers<[1], [0], [0], [1], [0, 0, 1, 1], [], []>} : vector<16x16xf32>, vector<16x16xf32>, vector<16x16xf32> -> vector<16x16xf32>
    %155 = vector.extract_strided_slice %10 {offsets = [7, 0, 0], sizes = [1, 16, 16], strides = [1, 1, 1]} : vector<20x16x16xf32> to vector<1x16x16xf32>
    %156 = vector.shape_cast %155 : vector<1x16x16xf32> to vector<16x16xf32>
    %cst_47 = arith.constant dense<0.000000e+00> : vector<16x16xf32>
    %157 = tpu.matmul %11, %156, %cst_47 {dimension_numbers = #tpu.dot_dimension_numbers<[1], [0], [0], [1], [0, 0, 1, 1], [], []>} : vector<16x16xf32>, vector<16x16xf32>, vector<16x16xf32> -> vector<16x16xf32>
    %158 = vector.extract_strided_slice %10 {offsets = [11, 0, 0], sizes = [1, 16, 16], strides = [1, 1, 1]} : vector<20x16x16xf32> to vector<1x16x16xf32>
    %159 = vector.shape_cast %158 : vector<1x16x16xf32> to vector<16x16xf32>
    %cst_48 = arith.constant dense<0.000000e+00> : vector<16x16xf32>
    %160 = tpu.matmul %11, %159, %cst_48 {dimension_numbers = #tpu.dot_dimension_numbers<[1], [0], [0], [1], [0, 0, 1, 1], [], []>} : vector<16x16xf32>, vector<16x16xf32>, vector<16x16xf32> -> vector<16x16xf32>
    %161 = vector.extract_strided_slice %10 {offsets = [15, 0, 0], sizes = [1, 16, 16], strides = [1, 1, 1]} : vector<20x16x16xf32> to vector<1x16x16xf32>
    %162 = vector.shape_cast %161 : vector<1x16x16xf32> to vector<16x16xf32>
    %cst_49 = arith.constant dense<0.000000e+00> : vector<16x16xf32>
    %163 = tpu.matmul %11, %162, %cst_49 {dimension_numbers = #tpu.dot_dimension_numbers<[1], [0], [0], [1], [0, 0, 1, 1], [], []>} : vector<16x16xf32>, vector<16x16xf32>, vector<16x16xf32> -> vector<16x16xf32>
    %164 = vector.extract_strided_slice %10 {offsets = [19, 0, 0], sizes = [1, 16, 16], strides = [1, 1, 1]} : vector<20x16x16xf32> to vector<1x16x16xf32>
    %165 = vector.shape_cast %164 : vector<1x16x16xf32> to vector<16x16xf32>
    %cst_50 = arith.constant dense<0.000000e+00> : vector<16x16xf32>
    %166 = tpu.matmul %11, %165, %cst_50 {dimension_numbers = #tpu.dot_dimension_numbers<[1], [0], [0], [1], [0, 0, 1, 1], [], []>} : vector<16x16xf32>, vector<16x16xf32>, vector<16x16xf32> -> vector<16x16xf32>
    %167 = arith.mulf %154, %154 : vector<16x16xf32>
    %168 = arith.mulf %157, %157 : vector<16x16xf32>
    %169 = arith.mulf %154, %157 : vector<16x16xf32>
    %170 = arith.subf %160, %167 : vector<16x16xf32>
    %171 = arith.subf %163, %168 : vector<16x16xf32>
    %172 = arith.subf %166, %169 : vector<16x16xf32>
    %cst_51 = arith.constant 2.000000e+00 : f32
    %173 = vector.broadcast %cst_51 : f32 to vector<16x16xf32>
    %174 = arith.mulf %173, %169 : vector<16x16xf32>
    %cst_52 = arith.constant 9.99999974E-5 : f32
    %175 = vector.broadcast %cst_52 : f32 to vector<16x16xf32>
    %176 = arith.addf %174, %175 : vector<16x16xf32>
    %cst_53 = arith.constant 2.000000e+00 : f32
    %177 = vector.broadcast %cst_53 : f32 to vector<16x16xf32>
    %178 = arith.mulf %177, %172 : vector<16x16xf32>
    %cst_54 = arith.constant 8.99999984E-4 : f32
    %179 = vector.broadcast %cst_54 : f32 to vector<16x16xf32>
    %180 = arith.addf %178, %179 : vector<16x16xf32>
    %181 = arith.mulf %176, %180 : vector<16x16xf32>
    %182 = arith.addf %167, %168 : vector<16x16xf32>
    %cst_55 = arith.constant 9.99999974E-5 : f32
    %183 = vector.broadcast %cst_55 : f32 to vector<16x16xf32>
    %184 = arith.addf %182, %183 : vector<16x16xf32>
    %185 = arith.addf %170, %171 : vector<16x16xf32>
    %cst_56 = arith.constant 8.99999984E-4 : f32
    %186 = vector.broadcast %cst_56 : f32 to vector<16x16xf32>
    %187 = arith.addf %185, %186 : vector<16x16xf32>
    %188 = arith.mulf %184, %187 : vector<16x16xf32>
    %189 = arith.divf %181, %188 : vector<16x16xf32>
    %190 = vector.shape_cast %189 : vector<16x16xf32> to vector<1x16x16xf32>
    %cst_57 = arith.constant dense<0.000000e+00> : vector<1xf32>
    %191 = vector.multi_reduction <add>, %190, %cst_57 [1, 2] : vector<1x16x16xf32> to vector<1xf32>
    %192 = vector.shape_cast %191 : vector<1xf32> to vector<1x1x1xf32>
    %193 = vector.extract %192[0, 0, 0] : f32 from vector<1x1x1xf32>
    %c3_i32 = arith.constant 3 : i32
    %194 = vector.broadcast %c3_i32 : i32 to vector<1x128xi32>
    %195 = arith.cmpi eq, %12, %194 : vector<1x128xi32>
    %196 = vector.broadcast %193 : f32 to vector<1x128xf32>
    %197 = arith.select %195, %196, %151 : vector<1x128xi1>, vector<1x128xf32>
    %198 = vector.shape_cast %197 : vector<1x128xf32> to vector<1x1x128xf32>
    %199 = vector.shape_cast %198 : vector<1x1x128xf32> to vector<1x1x128xf32>
    %200 = vector.broadcast %199 : vector<1x1x128xf32> to vector<1x8x128xf32>
    %c0_58 = arith.constant 0 : index
    %c0_59 = arith.constant 0 : index
    %c0_60 = arith.constant 0 : index
    %201 = vector.load %arg5[%c0_58, %c0_59, %c0_60] : memref<1x8x128xf32, #tpu.memory_space<vmem>>, vector<1x8x128xf32>
    tpu.vector_store %arg5[%c0_58, %c0_59, %c0_60], %200 {strides = array<i32>} : memref<1x8x128xf32, #tpu.memory_space<vmem>>, vector<1x8x128xf32>,
    return
  }
  func.func @transform_0(%arg0: i32) -> (i32, i32, i32) {
    %c0_i32 = arith.constant 0 : i32
    %c0_i32_0 = arith.constant 0 : i32
    %c0_i32_1 = arith.constant 0 : i32
    return %arg0, %c0_i32, %c0_i32_0 : i32, i32, i32
  }
  func.func @transform_1(%arg0: i32) -> (i32, i32, i32) {
    %c0_i32 = arith.constant 0 : i32
    %c0_i32_0 = arith.constant 0 : i32
    %c0_i32_1 = arith.constant 0 : i32
    return %arg0, %c0_i32, %c0_i32_0 : i32, i32, i32
  }
  func.func @transform_2(%arg0: i32) -> (i32, i32) {
    %c0_i32 = arith.constant 0 : i32
    %c0_i32_0 = arith.constant 0 : i32
    %c0_i32_1 = arith.constant 0 : i32
    return %c0_i32, %c0_i32_0 : i32, i32
  }
  func.func @transform_3(%arg0: i32) -> (i32, i32) {
    %c0_i32 = arith.constant 0 : i32
    %c0_i32_0 = arith.constant 0 : i32
    %c0_i32_1 = arith.constant 0 : i32
    return %c0_i32, %c0_i32_0 : i32, i32
  }
  func.func @transform_4(%arg0: i32) -> (i32, i32, i32) {
    %c0_i32 = arith.constant 0 : i32
    %c0_i32_0 = arith.constant 0 : i32
    %c0_i32_1 = arith.constant 0 : i32
    return %arg0, %c0_i32, %c0_i32_0 : i32, i32, i32
  }
}

</mosaic_0001>

<llo_original>
// kernel: tpu_custom_call.1
$region0: #{tpu_custom_call.1}
  #allocation0 [shape = 'u32[]', space=smem, size = 0x4, offset = 0x4, fixed_abs, tag = 'smem constant byte address 0x4 - core index']
  #allocation1 [shape = 'u32[72,128]{1,0:T(1,128)}', space=vmem, size = 0x9000, scoped, tag = 'internal scratch']
  %s0 = inlined_call_operand.hbm [shape: f32[8,16,16], index: 0, kind: input, shape index: {}]
  %s1 = inlined_call_operand.hbm [shape: f32[8,16,16], index: 1, kind: input, shape index: {}]
  %s2 = inlined_call_operand.hbm [shape: f32[16,16], index: 2, kind: input, shape index: {}]
  %s3 = inlined_call_operand.hbm [shape: f32[16,16], index: 3, kind: input, shape index: {}]
  %s4 = inlined_call_operand.hbm [shape: f32[2,8,128], index: 4, kind: output, shape index: {}]
  %s5 = sld [smem:[#allocation0]]
  $region65: #{tpu_custom_call.1} parent=0
    _
  %s7 = ssub.s32 1, %s5
  %s8 = scalar_select 0, %s7, %s5
  $region1: #{tpu_custom_call.1} parent=0
    #allocation2 [shape = 'u8[65536]{0}', space=vmem, size = 0x10000, scoped, tag = 'input window, operand 0']
    #allocation3 [shape = 's32[2]{0}', space=sflag, size = 0x8, scoped, tag = 'scoped memory for tpu_custom_call.1']
    #allocation4 [shape = 's32[2]{0}', space=sflag, size = 0x8, scoped, tag = 'scoped memory for tpu_custom_call.1']
    #allocation5 [shape = 'u8[65536]{0}', space=vmem, size = 0x10000, scoped, tag = 'input window, operand 1']
    #allocation6 [shape = 's32[2]{0}', space=sflag, size = 0x8, scoped, tag = 'scoped memory for tpu_custom_call.1']
    #allocation7 [shape = 'u8[8192]{0}', space=vmem, size = 0x2000, scoped, tag = 'input window, operand 2, single buffered']
    #allocation8 [shape = 'u8[8192]{0}', space=vmem, size = 0x2000, scoped, tag = 'input window, operand 3, single buffered']
    #allocation9 [shape = 's32[1]{0}', space=sflag, size = 0x4, scoped, tag = 'scoped memory for tpu_custom_call.1']
    #allocation10 [shape = 'u8[8192]{0}', space=vmem, size = 0x2000, scoped, tag = 'output window, operand 0']
    %9 = vsyncpa [#allocation3], 0
    %s10 = scalar_lea.sflag [#allocation3], 1
    %11 = vsyncpa %s10, 0
    %12 = vsyncpa [#allocation6], 0
    %s13 = scalar_lea.sflag [#allocation6], 1
    %14 = vsyncpa %s13, 0
    %15 = vsyncpa [#allocation9], 0
    %16 = vsyncpa [#allocation4], 0
    %s17 = scalar_lea.sflag [#allocation4], 1
    %18 = vsyncpa %s17, 0
    loop: start=0, step=1, limit=4
    $region2: #{tpu_custom_call.1} parent=1 // loop_pre_header
      _
    $region3: #{tpu_custom_call.1} parent=1 // loop_header
      %s20 = sphi 0, %s24
      %p21 = scmp.ge.s32.totalorder %s20, 4
      %s30 = sphi 0, %s32
      %s33 = sphi 0, %s30
      %s34 = sphi 0, %s33
      %s50 = sphi 0, %s34
      %s56 = sphi 0, %s58
      %s59 = sphi 0, %s56
      %s60 = sphi 0, %s59
      %s76 = sphi 0, %s60
      %s80 = sphi 0, %s80
      %s82 = sphi 0, %s80
      %s83 = sphi 0, %s82
      %s97 = sphi 0, %s83
      %s101 = sphi 0, %s101
      %s103 = sphi 0, %s101
      %s104 = sphi 0, %s103
      %s118 = sphi 0, %s104
      %s124 = sphi 0, %s126
      %s127 = sphi 0, %s124
      %s128 = sphi 0, %s127
      %s144 = sphi 0, %s128
    $region4: #{tpu_custom_call.1} parent=1 // loop_header_branch
      %23 = sbr.rel (%p21) target = $region8
    $region5: #{tpu_custom_call.1} parent=1 // loop_body
      %s25 = ssub.s32 %s20, 1
      %s26 = ssub.s32 %s20, 2
      %s27 = sadd.s32 %s20, 1
      %s28 = ssub.s32 %s20, %s27
      %p29 = scmp.eq.s32.totalorder %s28, 0
      %s31 = sadd.s32 %s30, 1
      %s32 = scalar_select %p29, %s30, %s31
      %p35 = pneg %p29
      %p36 = scmp.eq.s32.totalorder %s20, 1
      %p37 = por %p35, %p36
      %p38 = scmp.ne.s32.totalorder %s30, %s33
      %p39 = scmp.eq.s32.totalorder %s20, 0
      %p40 = por %p38, %p39
      %p41 = scmp.ne.s32.totalorder %s30, %s33
      %p42 = scmp.eq.s32.totalorder %s25, 1
      %p43 = por %p41, %p42
      %p44 = scmp.ne.s32.totalorder %s33, %s34
      %p45 = scmp.eq.s32.totalorder %s25, 0
      %p46 = por %p44, %p45
      %p47 = scmp.ne.s32.totalorder %s33, %s34
      %p48 = scmp.eq.s32.totalorder %s26, 1
      %p49 = por %p47, %p48
      %p51 = scmp.ne.s32.totalorder %s34, %s50
      %p52 = scmp.eq.s32.totalorder %s26, 0
      %p53 = por %p51, %p52
      %s54 = ssub.s32 %s20, %s27
      %p55 = scmp.eq.s32.totalorder %s54, 0
      %s57 = sadd.s32 %s56, 1
      %s58 = scalar_select %p55, %s56, %s57
      %p61 = pneg %p55
      %p62 = scmp.eq.s32.totalorder %s20, 1
      %p63 = por %p61, %p62
      %p64 = scmp.ne.s32.totalorder %s56, %s59
      %p65 = scmp.eq.s32.totalorder %s20, 0
      %p66 = por %p64, %p65
      %p67 = scmp.ne.s32.totalorder %s56, %s59
      %p68 = scmp.eq.s32.totalorder %s25, 1
      %p69 = por %p67, %p68
      %p70 = scmp.ne.s32.totalorder %s59, %s60
      %p71 = scmp.eq.s32.totalorder %s25, 0
      %p72 = por %p70, %p71
      %p73 = scmp.ne.s32.totalorder %s59, %s60
      %p74 = scmp.eq.s32.totalorder %s26, 1
      %p75 = por %p73, %p74
      %p77 = scmp.ne.s32.totalorder %s60, %s76
      %p78 = scmp.eq.s32.totalorder %s26, 0
      %p79 = por %p77, %p78
      %s81 = sadd.s32 %s80, 1
      %p84 = scmp.eq.s32.totalorder %s20, 1
      %p85 = scmp.ne.s32.totalorder %s80, %s82
      %p86 = scmp.eq.s32.totalorder %s20, 0
      %p87 = por %p85, %p86
      %p88 = scmp.ne.s32.totalorder %s80, %s82
      %p89 = scmp.eq.s32.totalorder %s25, 1
      %p90 = por %p88, %p89
      %p91 = scmp.ne.s32.totalorder %s82, %s83
      %p92 = scmp.eq.s32.totalorder %s25, 0
      %p93 = por %p91, %p92
      %p94 = scmp.ne.s32.totalorder %s82, %s83
      %p95 = scmp.eq.s32.totalorder %s26, 1
      %p96 = por %p94, %p95
      %p98 = scmp.ne.s32.totalorder %s83, %s97
      %p99 = scmp.eq.s32.totalorder %s26, 0
      %p100 = por %p98, %p99
      %s102 = sadd.s32 %s101, 1
      %p105 = scmp.eq.s32.totalorder %s20, 1
      %p106 = scmp.ne.s32.totalorder %s101, %s103
      %p107 = scmp.eq.s32.totalorder %s20, 0
      %p108 = por %p106, %p107
      %p109 = scmp.ne.s32.totalorder %s101, %s103
      %p110 = scmp.eq.s32.totalorder %s25, 1
      %p111 = por %p109, %p110
      %p112 = scmp.ne.s32.totalorder %s103, %s104
      %p113 = scmp.eq.s32.totalorder %s25, 0
      %p114 = por %p112, %p113
      %p115 = scmp.ne.s32.totalorder %s103, %s104
      %p116 = scmp.eq.s32.totalorder %s26, 1
      %p117 = por %p115, %p116
      %p119 = scmp.ne.s32.totalorder %s104, %s118
      %p120 = scmp.eq.s32.totalorder %s26, 0
      %p121 = por %p119, %p120
      %s122 = ssub.s32 %s20, %s27
      %p123 = scmp.eq.s32.totalorder %s122, 0
      %s125 = sadd.s32 %s124, 1
      %s126 = scalar_select %p123, %s124, %s125
      %p129 = pneg %p123
      %p130 = scmp.eq.s32.totalorder %s20, 1
      %p131 = por %p129, %p130
      %p132 = scmp.ne.s32.totalorder %s124, %s127
      %p133 = scmp.eq.s32.totalorder %s20, 0
      %p134 = por %p132, %p133
      %p135 = scmp.ne.s32.totalorder %s124, %s127
      %p136 = scmp.eq.s32.totalorder %s25, 1
      %p137 = por %p135, %p136
      %p138 = scmp.ne.s32.totalorder %s127, %s128
      %p139 = scmp.eq.s32.totalorder %s25, 0
      %p140 = por %p138, %p139
      %p141 = scmp.ne.s32.totalorder %s127, %s128
      %p142 = scmp.eq.s32.totalorder %s26, 1
      %p143 = por %p141, %p142
      %p145 = scmp.ne.s32.totalorder %s128, %s144
      %p146 = scmp.eq.s32.totalorder %s26, 0
      %p147 = por %p145, %p146
      %p148 = scmp.le.s32.totalorder 1, %s20
      %p149 = scmp.lt.s32.totalorder %s20, 3
      %p150 = pnand %p148, %p149
      %p151 = pneg %p150
      // Predicated region
      $region9: #{tpu_custom_call.1} parent=5 // pred_check
        _
      $region10: #{tpu_custom_call.1} parent=5 // pred_check_branch
        %153 = sbr.rel (%p150) target = $region12
      $region11: #{tpu_custom_call.1} parent=5 // pred_region
        %s154 = ssub.s32 %s20, 1
        // Predicated region
        $region13: #{tpu_custom_call.1} parent=11 // pred_check
          %p155 = pneg %p93
        $region14: #{tpu_custom_call.1} parent=11 // pred_check_branch
          %157 = sbr.rel (%p155) target = $region16
        $region15: #{tpu_custom_call.1} parent=11 // pred_region
          %159 = vsyncadd [#allocation6], 0
          %s160 = sshll.u32 %s2, 4
          %s161 = int_to_ptr.hbm [resolvable:$true] %s160
          %s162 = sshll.u32 [#allocation7], 4
          %s163 = int_to_ptr.vmem [resolvable:$true] %s162
          %168 = dma.hbm_to_vmem [thread:$0]  %s161, 256, %s163, [#allocation6], 128, 128, 8
        $region16: #{tpu_custom_call.1} parent=11 // pred_fallthru
          _
        // Predicated region
        $region17: #{tpu_custom_call.1} parent=11 // pred_check
          %p169 = pneg %p114
        $region18: #{tpu_custom_call.1} parent=11 // pred_check_branch
          %171 = sbr.rel (%p169) target = $region20
        $region19: #{tpu_custom_call.1} parent=11 // pred_region
          %173 = vsyncadd [#allocation9], 0
          %s174 = sshll.u32 %s3, 4
          %s175 = int_to_ptr.hbm [resolvable:$true] %s174
          %s176 = sshll.u32 [#allocation8], 4
          %s177 = int_to_ptr.vmem [resolvable:$true] %s176
          %182 = dma.hbm_to_vmem [thread:$0]  %s175, 256, %s177, [#allocation9], 128, 128, 8
        $region20: #{tpu_custom_call.1} parent=11 // pred_fallthru
          _
      $region12: #{tpu_custom_call.1} parent=5 // pred_fallthru
        _
      %p183 = scmp.lt.s32.totalorder %s20, 2
      // Predicated region
      $region21: #{tpu_custom_call.1} parent=5 // pred_check
        %p184 = pneg %p183
      $region22: #{tpu_custom_call.1} parent=5 // pred_check_branch
        %186 = sbr.rel (%p184) target = $region24
      $region23: #{tpu_custom_call.1} parent=5 // pred_region
        // Predicated region
        $region25: #{tpu_custom_call.1} parent=23 // pred_check
          %p187 = pneg %p40
        $region26: #{tpu_custom_call.1} parent=23 // pred_check_branch
          %189 = sbr.rel (%p187) target = $region28
        $region27: #{tpu_custom_call.1} parent=23 // pred_region
          %s190 = sand.u32 %s30, 1
          %s191 = scalar_lea.sflag [#allocation3], %s190
          %s192 = sand.u32 %s30, 1
          %s193 = smul.addr %s192, 64
          %s194 = scalar_lea.vmem [#allocation2], %s193
          %s195 = smul.u32 4, %s20
          %197 = vsyncadd %s191, 0
          %s198 = smul.addr %s195, 2
          %s199 = smul.addr %s198, 8
          %s200 = scalar_lea.hbm %s0, %s199
          %s201 = sshll.u32 %s200, 4
          %s202 = int_to_ptr.hbm [resolvable:$true] %s201
          %s203 = sshll.u32 %s194, 4
          %s204 = int_to_ptr.vmem [resolvable:$true] %s203
          %209 = dma.hbm_to_vmem [thread:$0]  %s202, 1024, %s204, %s191, 128, 128, 8
        $region28: #{tpu_custom_call.1} parent=23 // pred_fallthru
          _
        // Predicated region
        $region29: #{tpu_custom_call.1} parent=23 // pred_check
          %p210 = pneg %p66
        $region30: #{tpu_custom_call.1} parent=23 // pred_check_branch
          %212 = sbr.rel (%p210) target = $region32
        $region31: #{tpu_custom_call.1} parent=23 // pred_region
          %s213 = sand.u32 %s20, 1
          %s214 = scalar_lea.sflag [#allocation6], %s213
          %s215 = sand.u32 %s56, 1
          %s216 = smul.addr %s215, 64
          %s217 = scalar_lea.vmem [#allocation5], %s216
          %s218 = smul.u32 4, %s20
          %220 = vsyncadd %s214, 0
          %s221 = smul.addr %s218, 2
          %s222 = smul.addr %s221, 8
          %s223 = scalar_lea.hbm %s1, %s222
          %s224 = sshll.u32 %s223, 4
          %s225 = int_to_ptr.hbm [resolvable:$true] %s224
          %s226 = sshll.u32 %s217, 4
          %s227 = int_to_ptr.vmem [resolvable:$true] %s226
          %232 = dma.hbm_to_vmem [thread:$0]  %s225, 1024, %s227, %s214, 128, 128, 8
        $region32: #{tpu_custom_call.1} parent=23 // pred_fallthru
          _
      $region24: #{tpu_custom_call.1} parent=5 // pred_fallthru
        _
      %p233 = scmp.le.s32.totalorder 1, %s20
      %p234 = scmp.lt.s32.totalorder %s20, 3
      %p235 = pnand %p233, %p234
      %p236 = pneg %p235
      // Predicated region
      $region33: #{tpu_custom_call.1} parent=5 // pred_check
        _
      $region34: #{tpu_custom_call.1} parent=5 // pred_check_branch
        %238 = sbr.rel (%p235) target = $region36
      $region35: #{tpu_custom_call.1} parent=5 // pred_region
        %s239 = ssub.s32 %s20, 1
        %s240 = sand.u32 %s33, 1
        %s241 = scalar_lea.sflag [#allocation3], %s240
        %s242 = sand.u32 %s33, 1
        %s243 = smul.addr %s242, 64
        %s244 = scalar_lea.vmem [#allocation2], %s243
        // Predicated region
        $region37: #{tpu_custom_call.1} parent=35 // pred_check
          %p245 = pneg %p46
        $region38: #{tpu_custom_call.1} parent=35 // pred_check_branch
          %247 = sbr.rel (%p245) target = $region40
        $region39: #{tpu_custom_call.1} parent=35 // pred_region
          %249 = dma.done %s241, 1024
        $region40: #{tpu_custom_call.1} parent=35 // pred_fallthru
          _
        %s250 = sand.u32 %s25, 1
        %s251 = scalar_lea.sflag [#allocation6], %s250
        %s252 = sand.u32 %s59, 1
        %s253 = smul.addr %s252, 64
        %s254 = scalar_lea.vmem [#allocation5], %s253
        // Predicated region
        $region41: #{tpu_custom_call.1} parent=35 // pred_check
          %p255 = pneg %p72
        $region42: #{tpu_custom_call.1} parent=35 // pred_check_branch
          %257 = sbr.rel (%p255) target = $region44
        $region43: #{tpu_custom_call.1} parent=35 // pred_region
          %259 = dma.done %s251, 1024
        $region44: #{tpu_custom_call.1} parent=35 // pred_fallthru
          _
        // Predicated region
        $region45: #{tpu_custom_call.1} parent=35 // pred_check
          %p260 = pneg %p93
        $region46: #{tpu_custom_call.1} parent=35 // pred_check_branch
          %262 = sbr.rel (%p260) target = $region48
        $region47: #{tpu_custom_call.1} parent=35 // pred_region
          %264 = dma.done [#allocation6], 256
        $region48: #{tpu_custom_call.1} parent=35 // pred_fallthru
          _
        // Predicated region
        $region49: #{tpu_custom_call.1} parent=35 // pred_check
          %p265 = pneg %p114
        $region50: #{tpu_custom_call.1} parent=35 // pred_check_branch
          %267 = sbr.rel (%p265) target = $region52
        $region51: #{tpu_custom_call.1} parent=35 // pred_region
          %269 = dma.done [#allocation9], 256
        $region52: #{tpu_custom_call.1} parent=35 // pred_fallthru
          _
        %s270 = sand.u32 %s33, 1
        %s271 = scalar_lea.sflag [#allocation3], %s270
        %s272 = sand.u32 %s33, 1
        %s273 = smul.addr %s272, 64
        %s274 = scalar_lea.vmem [#allocation2], %s273
        %p275 = pneg %p46
        %p276 = pneg %p43
        %s277 = sand.u32 %s25, 1
        %s278 = scalar_lea.sflag [#allocation6], %s277
        %s279 = sand.u32 %s59, 1
        %s280 = smul.addr %s279, 64
        %s281 = scalar_lea.vmem [#allocation5], %s280
        %p282 = pneg %p72
        %p283 = pneg %p69
        %p284 = pneg %p93
        %p285 = pneg %p90
        %p286 = pneg %p114
        %p287 = pneg %p111
        %p288 = pneg %p140
        %p289 = pneg %p137
        %s290 = sand.u32 %s127, 1
        %s291 = scalar_lea.sflag [#allocation4], %s290
        %s292 = sand.u32 %s127, 1
        %s293 = smul.addr %s292, 8
        %s294 = scalar_lea.vmem [#allocation10], %s293
        %s295 = smul.u32 4, %s25
        %s296 = smul.u32 4, %s25
        %v297 = vld [vmem:[%s244] sm:$0xff]
        %v298 = vld [vmem:[%s244 + $0x8] sm:$0xff]
        %v299 = vld [vmem:[%s244 + $0x10] sm:$0xff]
        %v300 = vld [vmem:[%s244 + $0x18] sm:$0xff]
        %v301 = vld [vmem:[%s244 + $0x20] sm:$0xff]
        %v302 = vld [vmem:[%s244 + $0x28] sm:$0xff]
        %v303 = vld [vmem:[%s244 + $0x30] sm:$0xff]
        %v304 = vld [vmem:[%s244 + $0x38] sm:$0xff]
        %v305 = vld [vmem:[%s254] sm:$0xff]
        %v306 = vld [vmem:[%s254 + $0x8] sm:$0xff]
        %v307 = vld [vmem:[%s254 + $0x10] sm:$0xff]
        %v308 = vld [vmem:[%s254 + $0x18] sm:$0xff]
        %v309 = vld [vmem:[%s254 + $0x20] sm:$0xff]
        %v310 = vld [vmem:[%s254 + $0x28] sm:$0xff]
        %v311 = vld [vmem:[%s254 + $0x30] sm:$0xff]
        %v312 = vld [vmem:[%s254 + $0x38] sm:$0xff]
        %v313 = vmul.f32 %v297, %v297
        %v314 = vmul.f32 %v298, %v298
        %v315 = vmul.f32 %v299, %v299
        %v316 = vmul.f32 %v300, %v300
        %v317 = vmul.f32 %v301, %v301
        %v318 = vmul.f32 %v302, %v302
        %v319 = vmul.f32 %v303, %v303
        %v320 = vmul.f32 %v304, %v304
        %v321 = vmul.f32 %v305, %v305
        %v322 = vmul.f32 %v306, %v306
        %v323 = vmul.f32 %v307, %v307
        %v324 = vmul.f32 %v308, %v308
        %v325 = vmul.f32 %v309, %v309
        %v326 = vmul.f32 %v310, %v310
        %v327 = vmul.f32 %v311, %v311
        %v328 = vmul.f32 %v312, %v312
        %v329 = vmul.f32 %v297, %v305
        %v330 = vmul.f32 %v298, %v306
        %v331 = vmul.f32 %v299, %v307
        %v332 = vmul.f32 %v300, %v308
        %v333 = vmul.f32 %v301, %v309
        %v334 = vmul.f32 %v302, %v310
        %v335 = vmul.f32 %v303, %v311
        %v336 = vmul.f32 %v304, %v312
        %v337 = vld [vmem:[#allocation7] sm:$0xff]
        %v338 = vld [vmem:[#allocation7 + $0x8] sm:$0xff]
        %vm339 = vcmask 130048
        %v341 = vsel %vm339, %v297, 0
        %v344 = vsel %vm339, %v298, 0
        %v347 = vsel %vm339, %v299, 0
        %v350 = vsel %vm339, %v300, 0
        %v353 = vsel %vm339, %v301, 0
        %v356 = vsel %vm339, %v302, 0
        %v359 = vsel %vm339, %v303, 0
        %v362 = vsel %vm339, %v304, 0
        %v365 = vsel %vm339, %v305, 0
        %v368 = vsel %vm339, %v306, 0
        %v371 = vsel %vm339, %v307, 0
        %v374 = vsel %vm339, %v308, 0
        %v377 = vsel %vm339, %v309, 0
        %v380 = vsel %vm339, %v310, 0
        %v383 = vsel %vm339, %v311, 0
        %v386 = vsel %vm339, %v312, 0
        %v389 = vsel %vm339, %v313, 0
        %v392 = vsel %vm339, %v314, 0
        %v395 = vsel %vm339, %v315, 0
        %v398 = vsel %vm339, %v316, 0
        %v401 = vsel %vm339, %v317, 0
        %v404 = vsel %vm339, %v318, 0
        %v407 = vsel %vm339, %v319, 0
        %v410 = vsel %vm339, %v320, 0
        %v413 = vsel %vm339, %v321, 0
        %v416 = vsel %vm339, %v322, 0
        %v419 = vsel %vm339, %v323, 0
        %v422 = vsel %vm339, %v324, 0
        %v425 = vsel %vm339, %v325, 0
        %v428 = vsel %vm339, %v326, 0
        %v431 = vsel %vm339, %v327, 0
        %v434 = vsel %vm339, %v328, 0
        %v437 = vsel %vm339, %v329, 0
        %v440 = vsel %vm339, %v330, 0
        %v443 = vsel %vm339, %v331, 0
        %v446 = vsel %vm339, %v332, 0
        %v449 = vsel %vm339, %v333, 0
        %v452 = vsel %vm339, %v334, 0
        %v455 = vsel %vm339, %v335, 0
        %v458 = vsel %vm339, %v336, 0
        %460 = vmatpush.msra.mxu0 0.0
        %461 = vmatpush.msra.mxu0 0.0
        %462 = vmatpush.msra.mxu0 0.0
        %463 = vmatpush.msra.mxu0 0.0
        %464 = vmatpush.msra.mxu0 0.0
        %465 = vmatpush.msra.mxu0 0.0
        %466 = vmatpush.msra.mxu0 0.0
        %467 = vmatpush.msra.mxu0 0.0
        %468 = vmatpush.msra.mxu0 0.0
        %469 = vmatpush.msra.mxu0 0.0
        %470 = vmatpush.msra.mxu0 0.0
        %471 = vmatpush.msra.mxu0 0.0
        %472 = vmatpush.msra.mxu0 0.0
        %473 = vmatpush.msra.mxu0 0.0
        %474 = vmatpush.msra.mxu0 %v338
        %475 = vmatpush.msra.mxu0 %v337
        %476 = vmatmul.f32.gmra.mxu0 %v341
        %v477 = vpop.f32.mrf.mxu0
        %v478 = vadd.f32 0.0, %v477
        %479 = vmatmul.f32.gmra.mxu0 %v344
        %v480 = vpop.f32.mrf.mxu0
        %v481 = vadd.f32 0.0, %v480
        %482 = vmatmul.f32.gmra.mxu0 %v347
        %v483 = vpop.f32.mrf.mxu0
        %v484 = vadd.f32 0.0, %v483
        %485 = vmatmul.f32.gmra.mxu0 %v350
        %v486 = vpop.f32.mrf.mxu0
        %v487 = vadd.f32 0.0, %v486
        %488 = vmatmul.f32.gmra.mxu0 %v353
        %v489 = vpop.f32.mrf.mxu0
        %v490 = vadd.f32 0.0, %v489
        %491 = vmatmul.f32.gmra.mxu0 %v356
        %v492 = vpop.f32.mrf.mxu0
        %v493 = vadd.f32 0.0, %v492
        %494 = vmatmul.f32.gmra.mxu0 %v359
        %v495 = vpop.f32.mrf.mxu0
        %v496 = vadd.f32 0.0, %v495
        %497 = vmatmul.f32.gmra.mxu0 %v362
        %v498 = vpop.f32.mrf.mxu0
        %v499 = vadd.f32 0.0, %v498
        %500 = vmatmul.f32.gmra.mxu0 %v365
        %v501 = vpop.f32.mrf.mxu0
        %v502 = vadd.f32 0.0, %v501
        %503 = vmatmul.f32.gmra.mxu0 %v368
        %v504 = vpop.f32.mrf.mxu0
        %v505 = vadd.f32 0.0, %v504
        %506 = vmatmul.f32.gmra.mxu0 %v371
        %v507 = vpop.f32.mrf.mxu0
        %v508 = vadd.f32 0.0, %v507
        %509 = vmatmul.f32.gmra.mxu0 %v374
        %v510 = vpop.f32.mrf.mxu0
        %v511 = vadd.f32 0.0, %v510
        %512 = vmatmul.f32.gmra.mxu0 %v377
        %v513 = vpop.f32.mrf.mxu0
        %v514 = vadd.f32 0.0, %v513
        %515 = vmatmul.f32.gmra.mxu0 %v380
        %v516 = vpop.f32.mrf.mxu0
        %v517 = vadd.f32 0.0, %v516
        %518 = vmatmul.f32.gmra.mxu0 %v383
        %v519 = vpop.f32.mrf.mxu0
        %v520 = vadd.f32 0.0, %v519
        %521 = vmatmul.f32.gmra.mxu0 %v386
        %v522 = vpop.f32.mrf.mxu0
        %v523 = vadd.f32 0.0, %v522
        %524 = vmatmul.f32.gmra.mxu0 %v389
        %v525 = vpop.f32.mrf.mxu0
        %v526 = vadd.f32 0.0, %v525
        %527 = vmatmul.f32.gmra.mxu0 %v392
        %v528 = vpop.f32.mrf.mxu0
        %v529 = vadd.f32 0.0, %v528
        %530 = vmatmul.f32.gmra.mxu0 %v395
        %v531 = vpop.f32.mrf.mxu0
        %v532 = vadd.f32 0.0, %v531
        %533 = vmatmul.f32.gmra.mxu0 %v398
        %v534 = vpop.f32.mrf.mxu0
        %v535 = vadd.f32 0.0, %v534
        %536 = vmatmul.f32.gmra.mxu0 %v401
        %v537 = vpop.f32.mrf.mxu0
        %v538 = vadd.f32 0.0, %v537
        %539 = vmatmul.f32.gmra.mxu0 %v404
        %v540 = vpop.f32.mrf.mxu0
        %v541 = vadd.f32 0.0, %v540
        %542 = vmatmul.f32.gmra.mxu0 %v407
        %v543 = vpop.f32.mrf.mxu0
        %v544 = vadd.f32 0.0, %v543
        %545 = vmatmul.f32.gmra.mxu0 %v410
        %v546 = vpop.f32.mrf.mxu0
        %v547 = vadd.f32 0.0, %v546
        %548 = vmatmul.f32.gmra.mxu0 %v413
        %v549 = vpop.f32.mrf.mxu0
        %v550 = vadd.f32 0.0, %v549
        %551 = vmatmul.f32.gmra.mxu0 %v416
        %v552 = vpop.f32.mrf.mxu0
        %v553 = vadd.f32 0.0, %v552
        %554 = vmatmul.f32.gmra.mxu0 %v419
        %v555 = vpop.f32.mrf.mxu0
        %v556 = vadd.f32 0.0, %v555
        %557 = vmatmul.f32.gmra.mxu0 %v422
        %v558 = vpop.f32.mrf.mxu0
        %v559 = vadd.f32 0.0, %v558
        %560 = vmatmul.f32.gmra.mxu0 %v425
        %v561 = vpop.f32.mrf.mxu0
        %v562 = vadd.f32 0.0, %v561
        %563 = vmatmul.f32.gmra.mxu0 %v428
        %v564 = vpop.f32.mrf.mxu0
        %v565 = vadd.f32 0.0, %v564
        %566 = vmatmul.f32.gmra.mxu0 %v431
        %v567 = vpop.f32.mrf.mxu0
        %v568 = vadd.f32 0.0, %v567
        %569 = vmatmul.f32.gmra.mxu0 %v434
        %v570 = vpop.f32.mrf.mxu0
        %v571 = vadd.f32 0.0, %v570
        %572 = vmatmul.f32.gmra.mxu0 %v437
        %v573 = vpop.f32.mrf.mxu0
        %v574 = vadd.f32 0.0, %v573
        %575 = vmatmul.f32.gmra.mxu0 %v440
        %v576 = vpop.f32.mrf.mxu0
        %v577 = vadd.f32 0.0, %v576
        %578 = vmatmul.f32.gmra.mxu0 %v443
        %v579 = vpop.f32.mrf.mxu0
        %v580 = vadd.f32 0.0, %v579
        %581 = vmatmul.f32.gmra.mxu0 %v446
        %v582 = vpop.f32.mrf.mxu0
        %v583 = vadd.f32 0.0, %v582
        %584 = vmatmul.f32.gmra.mxu0 %v449
        %v585 = vpop.f32.mrf.mxu0
        %v586 = vadd.f32 0.0, %v585
        %587 = vmatmul.f32.gmra.mxu0 %v452
        %v588 = vpop.f32.mrf.mxu0
        %v589 = vadd.f32 0.0, %v588
        %590 = vmatmul.f32.gmra.mxu0 %v455
        %v591 = vpop.f32.mrf.mxu0
        %v592 = vadd.f32 0.0, %v591
        %593 = vmatmul.f32.gmra.mxu0 %v458
        %v594 = vpop.f32.mrf.mxu0
        %v595 = vadd.f32 0.0, %v594
        %596 = vdwg.mxu0
        %v597 = vld [vmem:[#allocation8] sm:$0xff]
        %v598 = vld [vmem:[#allocation8 + $0x8] sm:$0xff]
        %v599 = vlaneseq
        %v600 = vand.u32 %v599, 127
        %v602 = vsel %vm339, %v597, 0
        %v605 = vsel %vm339, %v598, 0
        %607 = vmatpush.msra.mxu0 0.0
        %608 = vmatpush.msra.mxu0 0.0
        %609 = vmatpush.msra.mxu0 0.0
        %610 = vmatpush.msra.mxu0 0.0
        %611 = vmatpush.msra.mxu0 0.0
        %612 = vmatpush.msra.mxu0 0.0
        %613 = vmatpush.msra.mxu0 0.0
        %614 = vmatpush.msra.mxu0 0.0
        %615 = vmatpush.msra.mxu0 0.0
        %616 = vmatpush.msra.mxu0 0.0
        %617 = vmatpush.msra.mxu0 0.0
        %618 = vmatpush.msra.mxu0 0.0
        %619 = vmatpush.msra.mxu0 0.0
        %620 = vmatpush.msra.mxu0 0.0
        %621 = vmatpush.msra.mxu0 %v481
        %622 = vmatpush.msra.mxu0 %v478
        %623 = vmatmul.f32.gmra.mxu0 %v602
        %v624 = vpop.f32.mrf.mxu0
        %v625 = vadd.f32 0.0, %v624
        %626 = vmatmul.f32.gmra.mxu0 %v605
        %v627 = vpop.f32.mrf.mxu0
        %v628 = vadd.f32 0.0, %v627
        %629 = vdwg.mxu0
        %630 = vmatpush.msra.mxu0 0.0
        %631 = vmatpush.msra.mxu0 0.0
        %632 = vmatpush.msra.mxu0 0.0
        %633 = vmatpush.msra.mxu0 0.0
        %634 = vmatpush.msra.mxu0 0.0
        %635 = vmatpush.msra.mxu0 0.0
        %636 = vmatpush.msra.mxu0 0.0
        %637 = vmatpush.msra.mxu0 0.0
        %638 = vmatpush.msra.mxu0 0.0
        %639 = vmatpush.msra.mxu0 0.0
        %640 = vmatpush.msra.mxu0 0.0
        %641 = vmatpush.msra.mxu0 0.0
        %642 = vmatpush.msra.mxu0 0.0
        %643 = vmatpush.msra.mxu0 0.0
        %644 = vmatpush.msra.mxu0 %v505
        %645 = vmatpush.msra.mxu0 %v502
        %646 = vmatmul.f32.gmra.mxu0 %v602
        %v647 = vpop.f32.mrf.mxu0
        %v648 = vadd.f32 0.0, %v647
        %649 = vmatmul.f32.gmra.mxu0 %v605
        %v650 = vpop.f32.mrf.mxu0
        %v651 = vadd.f32 0.0, %v650
        %652 = vdwg.mxu0
        %653 = vmatpush.msra.mxu0 0.0
        %654 = vmatpush.msra.mxu0 0.0
        %655 = vmatpush.msra.mxu0 0.0
        %656 = vmatpush.msra.mxu0 0.0
        %657 = vmatpush.msra.mxu0 0.0
        %658 = vmatpush.msra.mxu0 0.0
        %659 = vmatpush.msra.mxu0 0.0
        %660 = vmatpush.msra.mxu0 0.0
        %661 = vmatpush.msra.mxu0 0.0
        %662 = vmatpush.msra.mxu0 0.0
        %663 = vmatpush.msra.mxu0 0.0
        %664 = vmatpush.msra.mxu0 0.0
        %665 = vmatpush.msra.mxu0 0.0
        %666 = vmatpush.msra.mxu0 0.0
        %667 = vmatpush.msra.mxu0 %v529
        %668 = vmatpush.msra.mxu0 %v526
        %669 = vmatmul.f32.gmra.mxu0 %v602
        %v670 = vpop.f32.mrf.mxu0
        %v671 = vadd.f32 0.0, %v670
        %672 = vmatmul.f32.gmra.mxu0 %v605
        %v673 = vpop.f32.mrf.mxu0
        %v674 = vadd.f32 0.0, %v673
        %675 = vdwg.mxu0
        %676 = vmatpush.msra.mxu0 0.0
        %677 = vmatpush.msra.mxu0 0.0
        %678 = vmatpush.msra.mxu0 0.0
        %679 = vmatpush.msra.mxu0 0.0
        %680 = vmatpush.msra.mxu0 0.0
        %681 = vmatpush.msra.mxu0 0.0
        %682 = vmatpush.msra.mxu0 0.0
        %683 = vmatpush.msra.mxu0 0.0
        %684 = vmatpush.msra.mxu0 0.0
        %685 = vmatpush.msra.mxu0 0.0
        %686 = vmatpush.msra.mxu0 0.0
        %687 = vmatpush.msra.mxu0 0.0
        %688 = vmatpush.msra.mxu0 0.0
        %689 = vmatpush.msra.mxu0 0.0
        %690 = vmatpush.msra.mxu0 %v553
        %691 = vmatpush.msra.mxu0 %v550
        %692 = vmatmul.f32.gmra.mxu0 %v602
        %v693 = vpop.f32.mrf.mxu0
        %v694 = vadd.f32 0.0, %v693
        %695 = vmatmul.f32.gmra.mxu0 %v605
        %v696 = vpop.f32.mrf.mxu0
        %v697 = vadd.f32 0.0, %v696
        %698 = vdwg.mxu0
        %699 = vmatpush.msra.mxu0 0.0
        %700 = vmatpush.msra.mxu0 0.0
        %701 = vmatpush.msra.mxu0 0.0
        %702 = vmatpush.msra.mxu0 0.0
        %703 = vmatpush.msra.mxu0 0.0
        %704 = vmatpush.msra.mxu0 0.0
        %705 = vmatpush.msra.mxu0 0.0
        %706 = vmatpush.msra.mxu0 0.0
        %707 = vmatpush.msra.mxu0 0.0
        %708 = vmatpush.msra.mxu0 0.0
        %709 = vmatpush.msra.mxu0 0.0
        %710 = vmatpush.msra.mxu0 0.0
        %711 = vmatpush.msra.mxu0 0.0
        %712 = vmatpush.msra.mxu0 0.0
        %713 = vmatpush.msra.mxu0 %v577
        %714 = vmatpush.msra.mxu0 %v574
        %715 = vmatmul.f32.gmra.mxu0 %v602
        %v716 = vpop.f32.mrf.mxu0
        %v717 = vadd.f32 0.0, %v716
        %718 = vmatmul.f32.gmra.mxu0 %v605
        %v719 = vpop.f32.mrf.mxu0
        %v720 = vadd.f32 0.0, %v719
        %721 = vdwg.mxu0
        %v722 = vmul.f32 %v625, %v625
        %v723 = vmul.f32 %v628, %v628
        %v724 = vmul.f32 %v648, %v648
        %v725 = vmul.f32 %v651, %v651
        %v726 = vmul.f32 %v625, %v648
        %v727 = vmul.f32 %v628, %v651
        %v728 = vsub.f32 %v671, %v722
        %v729 = vsub.f32 %v674, %v723
        %v730 = vsub.f32 %v694, %v724
        %v731 = vsub.f32 %v697, %v725
        %v732 = vsub.f32 %v717, %v726
        %v733 = vsub.f32 %v720, %v727
        %v734 = vmul.f32 %v726, 2.0
        %v735 = vmul.f32 %v727, 2.0
        %v736 = vadd.f32 %v734, 0.0001
        %v737 = vadd.f32 %v735, 0.0001
        %v738 = vmul.f32 %v732, 2.0
        %v739 = vmul.f32 %v733, 2.0
        %v740 = vadd.f32 %v738, 0.0009
        %v741 = vadd.f32 %v739, 0.0009
        %v742 = vmul.f32 %v736, %v740
        %v743 = vmul.f32 %v737, %v741
        %v744 = vadd.f32 %v722, %v724
        %v745 = vadd.f32 %v723, %v725
        %v746 = vadd.f32 %v744, 0.0001
        %v747 = vadd.f32 %v745, 0.0001
        %v748 = vadd.f32 %v728, %v730
        %v749 = vadd.f32 %v729, %v731
        %v750 = vadd.f32 %v748, 0.0009
        %v751 = vadd.f32 %v749, 0.0009
        %v752 = vmul.f32 %v746, %v750
        %v753 = vmul.f32 %v747, %v751
        %v754 = vrcp.pop %v752
        %v755 = vmul.f32 %v752, %v754
        %v756 = vsub.f32 1.0, %v755
        %v757 = vmul.f32 %v754, %v756
        %v758 = vadd.f32 %v754, %v757
        %vm759 = vweird.f32 %v752
        %vm760 = vweird.f32 %v754
        %vm761 = vmor %vm759, %vm760
        %v762 = vsel %vm761, %v754, %v758
        %v763 = vand.u32 2147483647, %v752
        %vm764 = vcmp.eq.f32.partialorder %v763, 8.507059e+37
        %v765 = vand.u32 %v752, 2147483648
        %v766 = vor.u32 1.1754944e-38, %v765
        %v767 = vsel %vm764, %v766, %v762
        %v768 = vmul.f32 %v742, %v767
        %v769 = vrcp.pop %v753
        %v770 = vmul.f32 %v753, %v769
        %v771 = vsub.f32 1.0, %v770
        %v772 = vmul.f32 %v769, %v771
        %v773 = vadd.f32 %v769, %v772
        %vm774 = vweird.f32 %v753
        %vm775 = vweird.f32 %v769
        %vm776 = vmor %vm774, %vm775
        %v777 = vsel %vm776, %v769, %v773
        %v778 = vand.u32 2147483647, %v753
        %vm779 = vcmp.eq.f32.partialorder %v778, 8.507059e+37
        %v780 = vand.u32 %v753, 2147483648
        %v781 = vor.u32 1.1754944e-38, %v780
        %v782 = vsel %vm779, %v781, %v777
        %v783 = vmul.f32 %v743, %v782
        %v784 = vsel %vm339, %v768, 0.0
        %v785 = vsel %vm339, %v783, 0.0
        %v786 = vadd.f32 %v784, %v785
        %787 = vadd.xlane.f32.xlu0 %v786
        %v788 = vpop.xlane.xlu0 %787
        %v789 = vrot.slane %v788, 4
        %v790 = vadd.f32 %v788, %v789
        %v791 = vrot.slane %v790, 2
        %v792 = vadd.f32 %v790, %v791
        %v793 = vrot.slane %v792, 1
        %v794 = vadd.f32 %v792, %v793
        %s795 = vtos %v794
        %vm796 = vcmp.eq.s32.totalorder %v600, 0
        %v797 = vstv %s795
        %v798 = vsel %vm796, %v797, 0.0
        %799 = vmatpush.msra.mxu0 0.0
        %800 = vmatpush.msra.mxu0 0.0
        %801 = vmatpush.msra.mxu0 0.0
        %802 = vmatpush.msra.mxu0 0.0
        %803 = vmatpush.msra.mxu0 0.0
        %804 = vmatpush.msra.mxu0 0.0
        %805 = vmatpush.msra.mxu0 0.0
        %806 = vmatpush.msra.mxu0 0.0
        %807 = vmatpush.msra.mxu0 0.0
        %808 = vmatpush.msra.mxu0 0.0
        %809 = vmatpush.msra.mxu0 0.0
        %810 = vmatpush.msra.mxu0 0.0
        %811 = vmatpush.msra.mxu0 0.0
        %812 = vmatpush.msra.mxu0 0.0
        %813 = vmatpush.msra.mxu0 %v487
        %814 = vmatpush.msra.mxu0 %v484
        %815 = vmatmul.f32.gmra.mxu0 %v602
        %v816 = vpop.f32.mrf.mxu0
        %v817 = vadd.f32 0.0, %v816
        %818 = vmatmul.f32.gmra.mxu0 %v605
        %v819 = vpop.f32.mrf.mxu0
        %v820 = vadd.f32 0.0, %v819
        %821 = vdwg.mxu0
        %822 = vmatpush.msra.mxu0 0.0
        %823 = vmatpush.msra.mxu0 0.0
        %824 = vmatpush.msra.mxu0 0.0
        %825 = vmatpush.msra.mxu0 0.0
        %826 = vmatpush.msra.mxu0 0.0
        %827 = vmatpush.msra.mxu0 0.0
        %828 = vmatpush.msra.mxu0 0.0
        %829 = vmatpush.msra.mxu0 0.0
        %830 = vmatpush.msra.mxu0 0.0
        %831 = vmatpush.msra.mxu0 0.0
        %832 = vmatpush.msra.mxu0 0.0
        %833 = vmatpush.msra.mxu0 0.0
        %834 = vmatpush.msra.mxu0 0.0
        %835 = vmatpush.msra.mxu0 0.0
        %836 = vmatpush.msra.mxu0 %v511
        %837 = vmatpush.msra.mxu0 %v508
        %838 = vmatmul.f32.gmra.mxu0 %v602
        %v839 = vpop.f32.mrf.mxu0
        %v840 = vadd.f32 0.0, %v839
        %841 = vmatmul.f32.gmra.mxu0 %v605
        %v842 = vpop.f32.mrf.mxu0
        %v843 = vadd.f32 0.0, %v842
        %844 = vdwg.mxu0
        %845 = vmatpush.msra.mxu0 0.0
        %846 = vmatpush.msra.mxu0 0.0
        %847 = vmatpush.msra.mxu0 0.0
        %848 = vmatpush.msra.mxu0 0.0
        %849 = vmatpush.msra.mxu0 0.0
        %850 = vmatpush.msra.mxu0 0.0
        %851 = vmatpush.msra.mxu0 0.0
        %852 = vmatpush.msra.mxu0 0.0
        %853 = vmatpush.msra.mxu0 0.0
        %854 = vmatpush.msra.mxu0 0.0
        %855 = vmatpush.msra.mxu0 0.0
        %856 = vmatpush.msra.mxu0 0.0
        %857 = vmatpush.msra.mxu0 0.0
        %858 = vmatpush.msra.mxu0 0.0
        %859 = vmatpush.msra.mxu0 %v535
        %860 = vmatpush.msra.mxu0 %v532
        %861 = vmatmul.f32.gmra.mxu0 %v602
        %v862 = vpop.f32.mrf.mxu0
        %v863 = vadd.f32 0.0, %v862
        %864 = vmatmul.f32.gmra.mxu0 %v605
        %v865 = vpop.f32.mrf.mxu0
        %v866 = vadd.f32 0.0, %v865
        %867 = vdwg.mxu0
        %868 = vmatpush.msra.mxu0 0.0
        %869 = vmatpush.msra.mxu0 0.0
        %870 = vmatpush.msra.mxu0 0.0
        %871 = vmatpush.msra.mxu0 0.0
        %872 = vmatpush.msra.mxu0 0.0
        %873 = vmatpush.msra.mxu0 0.0
        %874 = vmatpush.msra.mxu0 0.0
        %875 = vmatpush.msra.mxu0 0.0
        %876 = vmatpush.msra.mxu0 0.0
        %877 = vmatpush.msra.mxu0 0.0
        %878 = vmatpush.msra.mxu0 0.0
        %879 = vmatpush.msra.mxu0 0.0
        %880 = vmatpush.msra.mxu0 0.0
        %881 = vmatpush.msra.mxu0 0.0
        %882 = vmatpush.msra.mxu0 %v559
        %883 = vmatpush.msra.mxu0 %v556
        %884 = vmatmul.f32.gmra.mxu0 %v602
        %v885 = vpop.f32.mrf.mxu0
        %v886 = vadd.f32 0.0, %v885
        %887 = vmatmul.f32.gmra.mxu0 %v605
        %v888 = vpop.f32.mrf.mxu0
        %v889 = vadd.f32 0.0, %v888
        %890 = vdwg.mxu0
        %891 = vmatpush.msra.mxu0 0.0
        %892 = vmatpush.msra.mxu0 0.0
        %893 = vmatpush.msra.mxu0 0.0
        %894 = vmatpush.msra.mxu0 0.0
        %895 = vmatpush.msra.mxu0 0.0
        %896 = vmatpush.msra.mxu0 0.0
        %897 = vmatpush.msra.mxu0 0.0
        %898 = vmatpush.msra.mxu0 0.0
        %899 = vmatpush.msra.mxu0 0.0
        %900 = vmatpush.msra.mxu0 0.0
        %901 = vmatpush.msra.mxu0 0.0
        %902 = vmatpush.msra.mxu0 0.0
        %903 = vmatpush.msra.mxu0 0.0
        %904 = vmatpush.msra.mxu0 0.0
        %905 = vmatpush.msra.mxu0 %v583
        %906 = vmatpush.msra.mxu0 %v580
        %907 = vmatmul.f32.gmra.mxu0 %v602
        %v908 = vpop.f32.mrf.mxu0
        %v909 = vadd.f32 0.0, %v908
        %910 = vmatmul.f32.gmra.mxu0 %v605
        %v911 = vpop.f32.mrf.mxu0
        %v912 = vadd.f32 0.0, %v911
        %913 = vdwg.mxu0
        %v914 = vmul.f32 %v817, %v817
        %v915 = vmul.f32 %v820, %v820
        %v916 = vmul.f32 %v840, %v840
        %v917 = vmul.f32 %v843, %v843
        %v918 = vmul.f32 %v817, %v840
        %v919 = vmul.f32 %v820, %v843
        %v920 = vsub.f32 %v863, %v914
        %v921 = vsub.f32 %v866, %v915
        %v922 = vsub.f32 %v886, %v916
        %v923 = vsub.f32 %v889, %v917
        %v924 = vsub.f32 %v909, %v918
        %v925 = vsub.f32 %v912, %v919
        %v926 = vmul.f32 %v918, 2.0
        %v927 = vmul.f32 %v919, 2.0
        %v928 = vadd.f32 %v926, 0.0001
        %v929 = vadd.f32 %v927, 0.0001
        %v930 = vmul.f32 %v924, 2.0
        %v931 = vmul.f32 %v925, 2.0
        %v932 = vadd.f32 %v930, 0.0009
        %v933 = vadd.f32 %v931, 0.0009
        %v934 = vmul.f32 %v928, %v932
        %v935 = vmul.f32 %v929, %v933
        %v936 = vadd.f32 %v914, %v916
        %v937 = vadd.f32 %v915, %v917
        %v938 = vadd.f32 %v936, 0.0001
        %v939 = vadd.f32 %v937, 0.0001
        %v940 = vadd.f32 %v920, %v922
        %v941 = vadd.f32 %v921, %v923
        %v942 = vadd.f32 %v940, 0.0009
        %v943 = vadd.f32 %v941, 0.0009
        %v944 = vmul.f32 %v938, %v942
        %v945 = vmul.f32 %v939, %v943
        %v946 = vrcp.pop %v944
        %v947 = vmul.f32 %v944, %v946
        %v948 = vsub.f32 1.0, %v947
        %v949 = vmul.f32 %v946, %v948
        %v950 = vadd.f32 %v946, %v949
        %vm951 = vweird.f32 %v944
        %vm952 = vweird.f32 %v946
        %vm953 = vmor %vm951, %vm952
        %v954 = vsel %vm953, %v946, %v950
        %v955 = vand.u32 2147483647, %v944
        %vm956 = vcmp.eq.f32.partialorder %v955, 8.507059e+37
        %v957 = vand.u32 %v944, 2147483648
        %v958 = vor.u32 1.1754944e-38, %v957
        %v959 = vsel %vm956, %v958, %v954
        %v960 = vmul.f32 %v934, %v959
        %v961 = vrcp.pop %v945
        %v962 = vmul.f32 %v945, %v961
        %v963 = vsub.f32 1.0, %v962
        %v964 = vmul.f32 %v961, %v963
        %v965 = vadd.f32 %v961, %v964
        %vm966 = vweird.f32 %v945
        %vm967 = vweird.f32 %v961
        %vm968 = vmor %vm966, %vm967
        %v969 = vsel %vm968, %v961, %v965
        %v970 = vand.u32 2147483647, %v945
        %vm971 = vcmp.eq.f32.partialorder %v970, 8.507059e+37
        %v972 = vand.u32 %v945, 2147483648
        %v973 = vor.u32 1.1754944e-38, %v972
        %v974 = vsel %vm971, %v973, %v969
        %v975 = vmul.f32 %v935, %v974
        %v976 = vsel %vm339, %v960, 0.0
        %v977 = vsel %vm339, %v975, 0.0
        %v978 = vadd.f32 %v976, %v977
        %979 = vadd.xlane.f32.xlu0 %v978
        %v980 = vpop.xlane.xlu0 %979
        %v981 = vrot.slane %v980, 4
        %v982 = vadd.f32 %v980, %v981
        %v983 = vrot.slane %v982, 2
        %v984 = vadd.f32 %v982, %v983
        %v985 = vrot.slane %v984, 1
        %v986 = vadd.f32 %v984, %v985
        %s987 = vtos %v986
        %vm988 = vcmp.eq.s32.totalorder %v600, 1
        %v989 = vstv %s987
        %v990 = vsel %vm988, %v989, %v798
        %991 = vmatpush.msra.mxu0 0.0
        %992 = vmatpush.msra.mxu0 0.0
        %993 = vmatpush.msra.mxu0 0.0
        %994 = vmatpush.msra.mxu0 0.0
        %995 = vmatpush.msra.mxu0 0.0
        %996 = vmatpush.msra.mxu0 0.0
        %997 = vmatpush.msra.mxu0 0.0
        %998 = vmatpush.msra.mxu0 0.0
        %999 = vmatpush.msra.mxu0 0.0
        %1000 = vmatpush.msra.mxu0 0.0
        %1001 = vmatpush.msra.mxu0 0.0
        %1002 = vmatpush.msra.mxu0 0.0
        %1003 = vmatpush.msra.mxu0 0.0
        %1004 = vmatpush.msra.mxu0 0.0
        %1005 = vmatpush.msra.mxu0 %v493
        %1006 = vmatpush.msra.mxu0 %v490
        %1007 = vmatmul.f32.gmra.mxu0 %v602
        %v1008 = vpop.f32.mrf.mxu0
        %v1009 = vadd.f32 0.0, %v1008
        %1010 = vmatmul.f32.gmra.mxu0 %v605
        %v1011 = vpop.f32.mrf.mxu0
        %v1012 = vadd.f32 0.0, %v1011
        %1013 = vdwg.mxu0
        %1014 = vmatpush.msra.mxu0 0.0
        %1015 = vmatpush.msra.mxu0 0.0
        %1016 = vmatpush.msra.mxu0 0.0
        %1017 = vmatpush.msra.mxu0 0.0
        %1018 = vmatpush.msra.mxu0 0.0
        %1019 = vmatpush.msra.mxu0 0.0
        %1020 = vmatpush.msra.mxu0 0.0
        %1021 = vmatpush.msra.mxu0 0.0
        %1022 = vmatpush.msra.mxu0 0.0
        %1023 = vmatpush.msra.mxu0 0.0
        %1024 = vmatpush.msra.mxu0 0.0
        %1025 = vmatpush.msra.mxu0 0.0
        %1026 = vmatpush.msra.mxu0 0.0
        %1027 = vmatpush.msra.mxu0 0.0
        %1028 = vmatpush.msra.mxu0 %v517
        %1029 = vmatpush.msra.mxu0 %v514
        %1030 = vmatmul.f32.gmra.mxu0 %v602
        %v1031 = vpop.f32.mrf.mxu0
        %v1032 = vadd.f32 0.0, %v1031
        %1033 = vmatmul.f32.gmra.mxu0 %v605
        %v1034 = vpop.f32.mrf.mxu0
        %v1035 = vadd.f32 0.0, %v1034
        %1036 = vdwg.mxu0
        %1037 = vmatpush.msra.mxu0 0.0
        %1038 = vmatpush.msra.mxu0 0.0
        %1039 = vmatpush.msra.mxu0 0.0
        %1040 = vmatpush.msra.mxu0 0.0
        %1041 = vmatpush.msra.mxu0 0.0
        %1042 = vmatpush.msra.mxu0 0.0
        %1043 = vmatpush.msra.mxu0 0.0
        %1044 = vmatpush.msra.mxu0 0.0
        %1045 = vmatpush.msra.mxu0 0.0
        %1046 = vmatpush.msra.mxu0 0.0
        %1047 = vmatpush.msra.mxu0 0.0
        %1048 = vmatpush.msra.mxu0 0.0
        %1049 = vmatpush.msra.mxu0 0.0
        %1050 = vmatpush.msra.mxu0 0.0
        %1051 = vmatpush.msra.mxu0 %v541
        %1052 = vmatpush.msra.mxu0 %v538
        %1053 = vmatmul.f32.gmra.mxu0 %v602
        %v1054 = vpop.f32.mrf.mxu0
        %v1055 = vadd.f32 0.0, %v1054
        %1056 = vmatmul.f32.gmra.mxu0 %v605
        %v1057 = vpop.f32.mrf.mxu0
        %v1058 = vadd.f32 0.0, %v1057
        %1059 = vdwg.mxu0
        %1060 = vmatpush.msra.mxu0 0.0
        %1061 = vmatpush.msra.mxu0 0.0
        %1062 = vmatpush.msra.mxu0 0.0
        %1063 = vmatpush.msra.mxu0 0.0
        %1064 = vmatpush.msra.mxu0 0.0
        %1065 = vmatpush.msra.mxu0 0.0
        %1066 = vmatpush.msra.mxu0 0.0
        %1067 = vmatpush.msra.mxu0 0.0
        %1068 = vmatpush.msra.mxu0 0.0
        %1069 = vmatpush.msra.mxu0 0.0
        %1070 = vmatpush.msra.mxu0 0.0
        %1071 = vmatpush.msra.mxu0 0.0
        %1072 = vmatpush.msra.mxu0 0.0
        %1073 = vmatpush.msra.mxu0 0.0
        %1074 = vmatpush.msra.mxu0 %v565
        %1075 = vmatpush.msra.mxu0 %v562
        %1076 = vmatmul.f32.gmra.mxu0 %v602
        %v1077 = vpop.f32.mrf.mxu0
        %v1078 = vadd.f32 0.0, %v1077
        %1079 = vmatmul.f32.gmra.mxu0 %v605
        %v1080 = vpop.f32.mrf.mxu0
        %v1081 = vadd.f32 0.0, %v1080
        %1082 = vdwg.mxu0
        %1083 = vmatpush.msra.mxu0 0.0
        %1084 = vmatpush.msra.mxu0 0.0
        %1085 = vmatpush.msra.mxu0 0.0
        %1086 = vmatpush.msra.mxu0 0.0
        %1087 = vmatpush.msra.mxu0 0.0
        %1088 = vmatpush.msra.mxu0 0.0
        %1089 = vmatpush.msra.mxu0 0.0
        %1090 = vmatpush.msra.mxu0 0.0
        %1091 = vmatpush.msra.mxu0 0.0
        %1092 = vmatpush.msra.mxu0 0.0
        %1093 = vmatpush.msra.mxu0 0.0
        %1094 = vmatpush.msra.mxu0 0.0
        %1095 = vmatpush.msra.mxu0 0.0
        %1096 = vmatpush.msra.mxu0 0.0
        %1097 = vmatpush.msra.mxu0 %v589
        %1098 = vmatpush.msra.mxu0 %v586
        %1099 = vmatmul.f32.gmra.mxu0 %v602
        %v1100 = vpop.f32.mrf.mxu0
        %v1101 = vadd.f32 0.0, %v1100
        %1102 = vmatmul.f32.gmra.mxu0 %v605
        %v1103 = vpop.f32.mrf.mxu0
        %v1104 = vadd.f32 0.0, %v1103
        %1105 = vdwg.mxu0
        %v1106 = vmul.f32 %v1009, %v1009
        %v1107 = vmul.f32 %v1012, %v1012
        %v1108 = vmul.f32 %v1032, %v1032
        %v1109 = vmul.f32 %v1035, %v1035
        %v1110 = vmul.f32 %v1009, %v1032
        %v1111 = vmul.f32 %v1012, %v1035
        %v1112 = vsub.f32 %v1055, %v1106
        %v1113 = vsub.f32 %v1058, %v1107
        %v1114 = vsub.f32 %v1078, %v1108
        %v1115 = vsub.f32 %v1081, %v1109
        %v1116 = vsub.f32 %v1101, %v1110
        %v1117 = vsub.f32 %v1104, %v1111
        %v1118 = vmul.f32 %v1110, 2.0
        %v1119 = vmul.f32 %v1111, 2.0
        %v1120 = vadd.f32 %v1118, 0.0001
        %v1121 = vadd.f32 %v1119, 0.0001
        %v1122 = vmul.f32 %v1116, 2.0
        %v1123 = vmul.f32 %v1117, 2.0
        %v1124 = vadd.f32 %v1122, 0.0009
        %v1125 = vadd.f32 %v1123, 0.0009
        %v1126 = vmul.f32 %v1120, %v1124
        %v1127 = vmul.f32 %v1121, %v1125
        %v1128 = vadd.f32 %v1106, %v1108
        %v1129 = vadd.f32 %v1107, %v1109
        %v1130 = vadd.f32 %v1128, 0.0001
        %v1131 = vadd.f32 %v1129, 0.0001
        %v1132 = vadd.f32 %v1112, %v1114
        %v1133 = vadd.f32 %v1113, %v1115
        %v1134 = vadd.f32 %v1132, 0.0009
        %v1135 = vadd.f32 %v1133, 0.0009
        %v1136 = vmul.f32 %v1130, %v1134
        %v1137 = vmul.f32 %v1131, %v1135
        %v1138 = vrcp.pop %v1136
        %v1139 = vmul.f32 %v1136, %v1138
        %v1140 = vsub.f32 1.0, %v1139
        %v1141 = vmul.f32 %v1138, %v1140
        %v1142 = vadd.f32 %v1138, %v1141
        %vm1143 = vweird.f32 %v1136
        %vm1144 = vweird.f32 %v1138
        %vm1145 = vmor %vm1143, %vm1144
        %v1146 = vsel %vm1145, %v1138, %v1142
        %v1147 = vand.u32 2147483647, %v1136
        %vm1148 = vcmp.eq.f32.partialorder %v1147, 8.507059e+37
        %v1149 = vand.u32 %v1136, 2147483648
        %v1150 = vor.u32 1.1754944e-38, %v1149
        %v1151 = vsel %vm1148, %v1150, %v1146
        %v1152 = vmul.f32 %v1126, %v1151
        %v1153 = vrcp.pop %v1137
        %v1154 = vmul.f32 %v1137, %v1153
        %v1155 = vsub.f32 1.0, %v1154
        %v1156 = vmul.f32 %v1153, %v1155
        %v1157 = vadd.f32 %v1153, %v1156
        %vm1158 = vweird.f32 %v1137
        %vm1159 = vweird.f32 %v1153
        %vm1160 = vmor %vm1158, %vm1159
        %v1161 = vsel %vm1160, %v1153, %v1157
        %v1162 = vand.u32 2147483647, %v1137
        %vm1163 = vcmp.eq.f32.partialorder %v1162, 8.507059e+37
        %v1164 = vand.u32 %v1137, 2147483648
        %v1165 = vor.u32 1.1754944e-38, %v1164
        %v1166 = vsel %vm1163, %v1165, %v1161
        %v1167 = vmul.f32 %v1127, %v1166
        %v1168 = vsel %vm339, %v1152, 0.0
        %v1169 = vsel %vm339, %v1167, 0.0
        %v1170 = vadd.f32 %v1168, %v1169
        %1171 = vadd.xlane.f32.xlu0 %v1170
        %v1172 = vpop.xlane.xlu0 %1171
        %v1173 = vrot.slane %v1172, 4
        %v1174 = vadd.f32 %v1172, %v1173
        %v1175 = vrot.slane %v1174, 2
        %v1176 = vadd.f32 %v1174, %v1175
        %v1177 = vrot.slane %v1176, 1
        %v1178 = vadd.f32 %v1176, %v1177
        %s1179 = vtos %v1178
        %vm1180 = vcmp.eq.s32.totalorder %v600, 2
        %v1181 = vstv %s1179
        %v1182 = vsel %vm1180, %v1181, %v990
        %1183 = vmatpush.msra.mxu0 0.0
        %1184 = vmatpush.msra.mxu0 0.0
        %1185 = vmatpush.msra.mxu0 0.0
        %1186 = vmatpush.msra.mxu0 0.0
        %1187 = vmatpush.msra.mxu0 0.0
        %1188 = vmatpush.msra.mxu0 0.0
        %1189 = vmatpush.msra.mxu0 0.0
        %1190 = vmatpush.msra.mxu0 0.0
        %1191 = vmatpush.msra.mxu0 0.0
        %1192 = vmatpush.msra.mxu0 0.0
        %1193 = vmatpush.msra.mxu0 0.0
        %1194 = vmatpush.msra.mxu0 0.0
        %1195 = vmatpush.msra.mxu0 0.0
        %1196 = vmatpush.msra.mxu0 0.0
        %1197 = vmatpush.msra.mxu0 %v499
        %1198 = vmatpush.msra.mxu0 %v496
        %1199 = vmatmul.f32.gmra.mxu0 %v602
        %v1200 = vpop.f32.mrf.mxu0
        %v1201 = vadd.f32 0.0, %v1200
        %1202 = vmatmul.f32.gmra.mxu0 %v605
        %v1203 = vpop.f32.mrf.mxu0
        %v1204 = vadd.f32 0.0, %v1203
        %1205 = vdwg.mxu0
        %1206 = vmatpush.msra.mxu0 0.0
        %1207 = vmatpush.msra.mxu0 0.0
        %1208 = vmatpush.msra.mxu0 0.0
        %1209 = vmatpush.msra.mxu0 0.0
        %1210 = vmatpush.msra.mxu0 0.0
        %1211 = vmatpush.msra.mxu0 0.0
        %1212 = vmatpush.msra.mxu0 0.0
        %1213 = vmatpush.msra.mxu0 0.0
        %1214 = vmatpush.msra.mxu0 0.0
        %1215 = vmatpush.msra.mxu0 0.0
        %1216 = vmatpush.msra.mxu0 0.0
        %1217 = vmatpush.msra.mxu0 0.0
        %1218 = vmatpush.msra.mxu0 0.0
        %1219 = vmatpush.msra.mxu0 0.0
        %1220 = vmatpush.msra.mxu0 %v523
        %1221 = vmatpush.msra.mxu0 %v520
        %1222 = vmatmul.f32.gmra.mxu0 %v602
        %v1223 = vpop.f32.mrf.mxu0
        %v1224 = vadd.f32 0.0, %v1223
        %1225 = vmatmul.f32.gmra.mxu0 %v605
        %v1226 = vpop.f32.mrf.mxu0
        %v1227 = vadd.f32 0.0, %v1226
        %1228 = vdwg.mxu0
        %1229 = vmatpush.msra.mxu0 0.0
        %1230 = vmatpush.msra.mxu0 0.0
        %1231 = vmatpush.msra.mxu0 0.0
        %1232 = vmatpush.msra.mxu0 0.0
        %1233 = vmatpush.msra.mxu0 0.0
        %1234 = vmatpush.msra.mxu0 0.0
        %1235 = vmatpush.msra.mxu0 0.0
        %1236 = vmatpush.msra.mxu0 0.0
        %1237 = vmatpush.msra.mxu0 0.0
        %1238 = vmatpush.msra.mxu0 0.0
        %1239 = vmatpush.msra.mxu0 0.0
        %1240 = vmatpush.msra.mxu0 0.0
        %1241 = vmatpush.msra.mxu0 0.0
        %1242 = vmatpush.msra.mxu0 0.0
        %1243 = vmatpush.msra.mxu0 %v547
        %1244 = vmatpush.msra.mxu0 %v544
        %1245 = vmatmul.f32.gmra.mxu0 %v602
        %v1246 = vpop.f32.mrf.mxu0
        %v1247 = vadd.f32 0.0, %v1246
        %1248 = vmatmul.f32.gmra.mxu0 %v605
        %v1249 = vpop.f32.mrf.mxu0
        %v1250 = vadd.f32 0.0, %v1249
        %1251 = vdwg.mxu0
        %1252 = vmatpush.msra.mxu0 0.0
        %1253 = vmatpush.msra.mxu0 0.0
        %1254 = vmatpush.msra.mxu0 0.0
        %1255 = vmatpush.msra.mxu0 0.0
        %1256 = vmatpush.msra.mxu0 0.0
        %1257 = vmatpush.msra.mxu0 0.0
        %1258 = vmatpush.msra.mxu0 0.0
        %1259 = vmatpush.msra.mxu0 0.0
        %1260 = vmatpush.msra.mxu0 0.0
        %1261 = vmatpush.msra.mxu0 0.0
        %1262 = vmatpush.msra.mxu0 0.0
        %1263 = vmatpush.msra.mxu0 0.0
        %1264 = vmatpush.msra.mxu0 0.0
        %1265 = vmatpush.msra.mxu0 0.0
        %1266 = vmatpush.msra.mxu0 %v571
        %1267 = vmatpush.msra.mxu0 %v568
        %1268 = vmatmul.f32.gmra.mxu0 %v602
        %v1269 = vpop.f32.mrf.mxu0
        %v1270 = vadd.f32 0.0, %v1269
        %1271 = vmatmul.f32.gmra.mxu0 %v605
        %v1272 = vpop.f32.mrf.mxu0
        %v1273 = vadd.f32 0.0, %v1272
        %1274 = vdwg.mxu0
        %1275 = vmatpush.msra.mxu0 0.0
        %1276 = vmatpush.msra.mxu0 0.0
        %1277 = vmatpush.msra.mxu0 0.0
        %1278 = vmatpush.msra.mxu0 0.0
        %1279 = vmatpush.msra.mxu0 0.0
        %1280 = vmatpush.msra.mxu0 0.0
        %1281 = vmatpush.msra.mxu0 0.0
        %1282 = vmatpush.msra.mxu0 0.0
        %1283 = vmatpush.msra.mxu0 0.0
        %1284 = vmatpush.msra.mxu0 0.0
        %1285 = vmatpush.msra.mxu0 0.0
        %1286 = vmatpush.msra.mxu0 0.0
        %1287 = vmatpush.msra.mxu0 0.0
        %1288 = vmatpush.msra.mxu0 0.0
        %1289 = vmatpush.msra.mxu0 %v595
        %1290 = vmatpush.msra.mxu0 %v592
        %1291 = vmatmul.f32.gmra.mxu0 %v602
        %v1292 = vpop.f32.mrf.mxu0
        %v1293 = vadd.f32 0.0, %v1292
        %1294 = vmatmul.f32.gmra.mxu0 %v605
        %v1295 = vpop.f32.mrf.mxu0
        %v1296 = vadd.f32 0.0, %v1295
        %1297 = vdwg.mxu0
        %v1298 = vmul.f32 %v1201, %v1201
        %v1299 = vmul.f32 %v1204, %v1204
        %v1300 = vmul.f32 %v1224, %v1224
        %v1301 = vmul.f32 %v1227, %v1227
        %v1302 = vmul.f32 %v1201, %v1224
        %v1303 = vmul.f32 %v1204, %v1227
        %v1304 = vsub.f32 %v1247, %v1298
        %v1305 = vsub.f32 %v1250, %v1299
        %v1306 = vsub.f32 %v1270, %v1300
        %v1307 = vsub.f32 %v1273, %v1301
        %v1308 = vsub.f32 %v1293, %v1302
        %v1309 = vsub.f32 %v1296, %v1303
        %v1310 = vmul.f32 %v1302, 2.0
        %v1311 = vmul.f32 %v1303, 2.0
        %v1312 = vadd.f32 %v1310, 0.0001
        %v1313 = vadd.f32 %v1311, 0.0001
        %v1314 = vmul.f32 %v1308, 2.0
        %v1315 = vmul.f32 %v1309, 2.0
        %v1316 = vadd.f32 %v1314, 0.0009
        %v1317 = vadd.f32 %v1315, 0.0009
        %v1318 = vmul.f32 %v1312, %v1316
        %v1319 = vmul.f32 %v1313, %v1317
        %v1320 = vadd.f32 %v1298, %v1300
        %v1321 = vadd.f32 %v1299, %v1301
        %v1322 = vadd.f32 %v1320, 0.0001
        %v1323 = vadd.f32 %v1321, 0.0001
        %v1324 = vadd.f32 %v1304, %v1306
        %v1325 = vadd.f32 %v1305, %v1307
        %v1326 = vadd.f32 %v1324, 0.0009
        %v1327 = vadd.f32 %v1325, 0.0009
        %v1328 = vmul.f32 %v1322, %v1326
        %v1329 = vmul.f32 %v1323, %v1327
        %v1330 = vrcp.pop %v1328
        %v1331 = vmul.f32 %v1328, %v1330
        %v1332 = vsub.f32 1.0, %v1331
        %v1333 = vmul.f32 %v1330, %v1332
        %v1334 = vadd.f32 %v1330, %v1333
        %vm1335 = vweird.f32 %v1328
        %vm1336 = vweird.f32 %v1330
        %vm1337 = vmor %vm1335, %vm1336
        %v1338 = vsel %vm1337, %v1330, %v1334
        %v1339 = vand.u32 2147483647, %v1328
        %vm1340 = vcmp.eq.f32.partialorder %v1339, 8.507059e+37
        %v1341 = vand.u32 %v1328, 2147483648
        %v1342 = vor.u32 1.1754944e-38, %v1341
        %v1343 = vsel %vm1340, %v1342, %v1338
        %v1344 = vmul.f32 %v1318, %v1343
        %v1345 = vrcp.pop %v1329
        %v1346 = vmul.f32 %v1329, %v1345
        %v1347 = vsub.f32 1.0, %v1346
        %v1348 = vmul.f32 %v1345, %v1347
        %v1349 = vadd.f32 %v1345, %v1348
        %vm1350 = vweird.f32 %v1329
        %vm1351 = vweird.f32 %v1345
        %vm1352 = vmor %vm1350, %vm1351
        %v1353 = vsel %vm1352, %v1345, %v1349
        %v1354 = vand.u32 2147483647, %v1329
        %vm1355 = vcmp.eq.f32.partialorder %v1354, 8.507059e+37
        %v1356 = vand.u32 %v1329, 2147483648
        %v1357 = vor.u32 1.1754944e-38, %v1356
        %v1358 = vsel %vm1355, %v1357, %v1353
        %v1359 = vmul.f32 %v1319, %v1358
        %v1360 = vsel %vm339, %v1344, 0.0
        %v1361 = vsel %vm339, %v1359, 0.0
        %v1362 = vadd.f32 %v1360, %v1361
        %1363 = vadd.xlane.f32.xlu0 %v1362
        %v1364 = vpop.xlane.xlu0 %1363
        %v1365 = vrot.slane %v1364, 4
        %v1366 = vadd.f32 %v1364, %v1365
        %v1367 = vrot.slane %v1366, 2
        %v1368 = vadd.f32 %v1366, %v1367
        %v1369 = vrot.slane %v1368, 1
        %v1370 = vadd.f32 %v1368, %v1369
        %s1371 = vtos %v1370
        %vm1372 = vcmp.eq.s32.totalorder %v600, 3
        %v1373 = vstv %s1371
        %v1374 = vsel %vm1372, %v1373, %v1182
        %1375 = vst [vmem:[%s294] sm:$0xff] %v1374
        %s1376 = sand.u32 %s127, 1
        %s1377 = scalar_lea.sflag [#allocation4], %s1376
        %s1378 = sand.u32 %s127, 1
        %s1379 = smul.addr %s1378, 8
        %s1380 = scalar_lea.vmem [#allocation10], %s1379
        // Predicated region
        $region53: #{tpu_custom_call.1} parent=35 // pred_check
          %p1381 = pneg %p137
        $region54: #{tpu_custom_call.1} parent=35 // pred_check_branch
          %1383 = sbr.rel (%p1381) target = $region56
        $region55: #{tpu_custom_call.1} parent=35 // pred_region
          %1385 = vsyncadd %s1377, 0
          %s1386 = smul.addr %s25, 8
          %s1387 = scalar_lea.hbm %s4, %s1386
          %s1389 = sshll.u32 %s1380, 4
          %s1390 = int_to_ptr.vmem [resolvable:$true] %s1389
          %s1391 = sshll.u32 %s1387, 4
          %s1392 = int_to_ptr.hbm [resolvable:$true] %s1391
          %1394 = dma.vmem_to_hbm [thread:$0]  %s1390, 128, %s1392, %s1377
        $region56: #{tpu_custom_call.1} parent=35 // pred_fallthru
          _
      $region36: #{tpu_custom_call.1} parent=5 // pred_fallthru
        _
      %p1395 = scmp.le.s32.totalorder 2, %s20
      // Predicated region
      $region57: #{tpu_custom_call.1} parent=5 // pred_check
        %p1396 = pneg %p1395
      $region58: #{tpu_custom_call.1} parent=5 // pred_check_branch
        %1398 = sbr.rel (%p1396) target = $region60
      $region59: #{tpu_custom_call.1} parent=5 // pred_region
        %s1399 = ssub.s32 %s20, 2
        // Predicated region
        $region61: #{tpu_custom_call.1} parent=59 // pred_check
          %p1400 = pneg %p143
        $region62: #{tpu_custom_call.1} parent=59 // pred_check_branch
          %1402 = sbr.rel (%p1400) target = $region64
        $region63: #{tpu_custom_call.1} parent=59 // pred_region
          %s1403 = sand.u32 %s128, 1
          %s1404 = scalar_lea.sflag [#allocation4], %s1403
          %s1405 = sand.u32 %s128, 1
          %s1406 = smul.addr %s1405, 8
          %s1407 = scalar_lea.vmem [#allocation10], %s1406
          %1409 = dma.done %s1404, 128
        $region64: #{tpu_custom_call.1} parent=59 // pred_fallthru
          _
      $region60: #{tpu_custom_call.1} parent=5 // pred_fallthru
        _
    $region6: #{tpu_custom_call.1} parent=1 // loop_footer
      %s24 = sadd.s32 1, %s20
    $region7: #{tpu_custom_call.1} parent=1 // loop_footer_branch
      %19 = sbr.rel target = $region3
    $region8: #{tpu_custom_call.1} parent=1 // loop_exit
      _
    %1410 = vsyncpa [#allocation3], 1
    %s1411 = scalar_lea.sflag [#allocation3], 1
    %1412 = vsyncpa %s1411, 1
    %1413 = vsyncpa [#allocation6], 1
    %s1414 = scalar_lea.sflag [#allocation6], 1
    %1415 = vsyncpa %s1414, 1
    %1416 = vsyncpa [#allocation9], 1
    %1417 = vsyncpa [#allocation4], 1
    %s1418 = scalar_lea.sflag [#allocation4], 1
    %1419 = vsyncpa %s1418, 1

</llo_original>
